<compile_context>
chip_gen: v5e
topology: v5e:2x2
jax: 0.10.0
libtpu: 0.0.40
codegen_flags: <defaults>
</compile_context>

<pallas_src>
import jax
import jax.numpy as jnp
from jax.experimental import pallas as pl
from jax.experimental.pallas import tpu as pltpu

# ---------------- configuration (module hyper-parameters) ----------------
IN_CH = 4                      # in_channels
OUT_CH = 8                     # out_channels
RATES = (1, 2, 3)              # atrous_rates -> 3 dilated branches + 1x1 branch
N_BRANCH = len(RATES) + 1      # 4
N = 2                          # batch
H = W = 16                     # spatial
HW = H * W                     # 256
PAD = max(RATES)               # zero padding rows (top/bottom)
HP = H + 2 * PAD               # 22
PADF = 8                       # extra zero lanes at both ends of flattened axis
FLAT = HP * W                  # 352
FP = FLAT + 2 * PADF           # 368
BN_EPS = 1e-5

# Distinct tap offsets (dh, dw) used by any branch.  Index 0 is the shared
# centre tap (used by the 1x1 branch and all three dilated branches).
OFFSETS = [(0, 0)]
for _r in RATES:
    for _kh in range(3):
        for _kw in range(3):
            _off = ((_kh - 1) * _r, (_kw - 1) * _r)
            if _off != (0, 0):
                OFFSETS.append(_off)
OFF_INDEX = {off: i for i, off in enumerate(OFFSETS)}
NOFF = len(OFFSETS)            # 25


# ------------------------------- kernel ----------------------------------
def _aspp_kernel(x_ref, wall_ref, wpt_ref, bn_ref, o_ref):
    """Whole ASPP forward in one invocation.

    x_ref   : (N, Cin, FP)        H-padded, W-flattened, lane-padded input
    wall_ref: (4*Cout, NOFF*Cin)  all branch conv weights (centre tap shared)
    wpt_ref : (Cout, 4*Cout)      projection 1x1 weights, transposed
    bn_ref  : (5*Cout, 2)         rows 0..31: branch BN (scale, shift),
                                  rows 32..39: projection BN (scale, shift)
    o_ref   : (N, Cout, H*W)      lane-dense output
    """
    wall = wall_ref[...]                                   # (32, 100)
    wpt = wpt_ref[...]                                     # (8, 32)
    bsc = bn_ref[0:N_BRANCH * OUT_CH, 0:1]                 # (32, 1)
    bsh = bn_ref[0:N_BRANCH * OUT_CH, 1:2]                 # (32, 1)
    psc = bn_ref[N_BRANCH * OUT_CH:(N_BRANCH + 1) * OUT_CH, 0:1]   # (8, 1)
    psh = bn_ref[N_BRANCH * OUT_CH:(N_BRANCH + 1) * OUT_CH, 1:2]   # (8, 1)

    # w-coordinate of every lane (pixel index p = h*W + w; W is a power of 2).
    col = jax.lax.broadcasted_iota(jnp.int32, (IN_CH, HW), 1) & (W - 1)

    for n in range(N):                         # unrolled; single grid step
        xn = x_ref[n]                          # (Cin, FP)

        # ---- im2col slab: one contiguous lane slice per tap offset ----
        slabs = []
        for dh, dw in OFFSETS:
            start = PADF + (PAD + dh) * W + dw
            sl = xn[:, start:start + HW]       # (Cin, HW), static lane slice
            if dw > 0:                         # zero out row-wrap columns
                sl = jnp.where(col < (W - dw), sl, 0.0)
            elif dw < 0:
                sl = jnp.where(col >= (-dw), sl, 0.0)
            slabs.append(sl)
        slab = jnp.concatenate(slabs, axis=0)  # (NOFF*Cin, HW) = (100, 256)

        # ---- all 4 branches in one matmul + folded BN + ReLU ----
        y = jnp.dot(wall, slab, preferred_element_type=jnp.float32)   # (32, 256)
        y = jnp.maximum(y * bsc + bsh, 0.0)

        # ---- projection 1x1 (implicit concat) + BN + ReLU (+ Dropout=id) ----
        out = jnp.dot(wpt, y, preferred_element_type=jnp.float32)     # (8, 256)
        out = jnp.maximum(out * psc + psh, 0.0)
        o_ref[n] = out


# ------------------------------- wrapper ---------------------------------
@jax.jit
def aspp_forward(x_nchw, w1, w3, wp, bn_scale, bn_shift, p_scale, p_shift):
    """x_nchw: (N, Cin, H, W) -> (N, Cout, H, W), matching the PyTorch module."""
    # ---- layout plumbing (no FLOPs): pad H, flatten (H, W), pad lanes ----
    xh = jnp.pad(x_nchw, ((0, 0), (0, 0), (PAD, PAD), (0, 0)))      # (N,Cin,HP,W)
    x_flat = jnp.pad(xh.reshape(N, IN_CH, FLAT),
                     ((0, 0), (0, 0), (PADF, PADF)))                # (N,Cin,FP)

    # ---- pack all branch conv weights into one (4*Cout, NOFF*Cin) matrix ----
    w_all = jnp.zeros((N_BRANCH * OUT_CH, NOFF * IN_CH), jnp.float32)
    w_all = w_all.at[0:OUT_CH, 0:IN_CH].set(w1.T)                   # 1x1 branch
    for ri, r in enumerate(RATES):
        for kh in range(3):
            for kw in range(3):
                oi = OFF_INDEX[((kh - 1) * r, (kw - 1) * r)]
                tap = w3[ri * 9 + kh * 3 + kw]                      # (Cin, Cout)
                w_all = w_all.at[(ri + 1) * OUT_CH:(ri + 2) * OUT_CH,
                                 oi * IN_CH:(oi + 1) * IN_CH].set(tap.T)
    wp_t = wp.T                                                     # (Cout, 4*Cout)

    # ---- pack folded BN params into one dense operand ----
    bn = jnp.zeros(((N_BRANCH + 1) * OUT_CH, 2), jnp.float32)
    bn = bn.at[0:N_BRANCH * OUT_CH, 0].set(bn_scale.reshape(-1))
    bn = bn.at[0:N_BRANCH * OUT_CH, 1].set(bn_shift.reshape(-1))
    bn = bn.at[N_BRANCH * OUT_CH:, 0].set(p_scale)
    bn = bn.at[N_BRANCH * OUT_CH:, 1].set(p_shift)

    out_flat = pl.pallas_call(
        _aspp_kernel,
        out_shape=jax.ShapeDtypeStruct((N, OUT_CH, HW), jnp.float32),
        in_specs=[pl.BlockSpec(memory_space=pltpu.MemorySpace.VMEM)] * 4,
        out_specs=pl.BlockSpec(memory_space=pltpu.MemorySpace.VMEM),
    )(x_flat, w_all, wp_t, bn)
    return out_flat.reshape(N, OUT_CH, H, W)


# ---------------- pure-JAX reference (for correctness check) ----------------
def ref_aspp(x, w1, w3, wp, bn_scale, bn_shift, p_scale, p_shift):
    hi = jax.lax.Precision.HIGHEST
    outs = []
    y = jnp.einsum('nchw,cd->ndhw', x, w1, precision=hi)
    outs.append(jnp.maximum(y * bn_scale[0][None, :, None, None]
                            + bn_shift[0][None, :, None, None], 0.0))
    for ri, r in enumerate(RATES):
        k = w3[ri * 9:(ri + 1) * 9].reshape(3, 3, IN_CH, OUT_CH)    # HWIO
        y = jax.lax.conv_general_dilated(
            x, k, window_strides=(1, 1),
            padding=[(r, r), (r, r)], rhs_dilation=(r, r),
            dimension_numbers=('NCHW', 'HWIO', 'NCHW'), precision=hi)
        outs.append(jnp.maximum(y * bn_scale[ri + 1][None, :, None, None]
                                + bn_shift[ri + 1][None, :, None, None], 0.0))
    cat = jnp.concatenate(outs, axis=1)
    out = jnp.einsum('nchw,cd->ndhw', cat, wp, precision=hi)
    return jnp.maximum(out * p_scale[None, :, None, None]
                       + p_shift[None, :, None, None], 0.0)


# ---------------- deterministic parameter construction ----------------
def make_params(key):
    ks = jax.random.split(key, 11)
    w1 = jax.random.normal(ks[0], (IN_CH, OUT_CH), jnp.float32) * 0.2
    w3 = jax.random.normal(ks[1], (len(RATES) * 9, IN_CH, OUT_CH),
                           jnp.float32) * 0.1
    wp = jax.random.normal(ks[2], (N_BRANCH * OUT_CH, OUT_CH), jnp.float32) * 0.1

    def folded_bn(kg, kb, km, kv, prefix):
        gamma = jax.random.uniform(kg, prefix + (OUT_CH,), jnp.float32, 0.5, 1.5)
        beta = jax.random.normal(kb, prefix + (OUT_CH,), jnp.float32) * 0.1
        mean = jax.random.normal(km, prefix + (OUT_CH,), jnp.float32) * 0.1
        var = jax.random.uniform(kv, prefix + (OUT_CH,), jnp.float32, 0.5, 1.5)
        scale = gamma / jnp.sqrt(var + BN_EPS)
        shift = beta - mean * scale
        return scale, shift

    bn_scale, bn_shift = folded_bn(ks[3], ks[4], ks[5], ks[6], (N_BRANCH,))
    p_scale, p_shift = folded_bn(ks[7], ks[8], ks[9], ks[10], ())
    return w1, w3, wp, bn_scale, bn_shift, p_scale, p_shift


if __name__ == "__main__":
    key = jax.random.PRNGKey(0)
    kx, kp = jax.random.split(key)
    x = jax.random.normal(kx, (N, IN_CH, H, W), jnp.float32)    # NCHW, like PyTorch
    params = make_params(kp)

    out = jax.block_until_ready(aspp_forward(x, *params))
    ref = ref_aspp(x, *params)

    assert out.shape == (N, OUT_CH, H, W)
    err = jnp.max(jnp.abs(out - ref))
    assert jnp.allclose(out, ref, atol=1e-4, rtol=1e-4), f"max abs diff {err}"

    print("KERNEL_OK")
</pallas_src>

<mosaic_0001>
module attributes {stable_mosaic.version = 11 : i64} {
  func.func @_aspp_kernel(%arg0: memref<2x4x368xf32, #tpu.memory_space<vmem>>, %arg1: memref<32x100xf32, #tpu.memory_space<vmem>>, %arg2: memref<8x32xf32, #tpu.memory_space<vmem>>, %arg3: memref<40x2xf32, #tpu.memory_space<vmem>>, %arg4: memref<2x8x256xf32, #tpu.memory_space<vmem>>) attributes {dimension_semantics = [], scalar_prefetch = 0 : i64, scratch_operands = 0 : i64, tpu.core_type = #tpu.core_type<tc>} {
    %c0 = arith.constant 0 : index
    %c0_0 = arith.constant 0 : index
    %0 = vector.load %arg1[%c0, %c0_0] : memref<32x100xf32, #tpu.memory_space<vmem>>, vector<32x100xf32>
    %c0_1 = arith.constant 0 : index
    %c0_2 = arith.constant 0 : index
    %1 = vector.load %arg2[%c0_1, %c0_2] : memref<8x32xf32, #tpu.memory_space<vmem>>, vector<8x32xf32>
    %c0_3 = arith.constant 0 : index
    %c0_4 = arith.constant 0 : index
    %2 = vector.load %arg3[%c0_3, %c0_4] : memref<40x2xf32, #tpu.memory_space<vmem>>, vector<32x1xf32>
    %c0_5 = arith.constant 0 : index
    %c1 = arith.constant 1 : index
    %3 = vector.load %arg3[%c0_5, %c1] : memref<40x2xf32, #tpu.memory_space<vmem>>, vector<32x1xf32>
    %c32 = arith.constant 32 : index
    %c0_6 = arith.constant 0 : index
    %4 = vector.load %arg3[%c32, %c0_6] : memref<40x2xf32, #tpu.memory_space<vmem>>, vector<8x1xf32>
    %c32_7 = arith.constant 32 : index
    %c1_8 = arith.constant 1 : index
    %5 = vector.load %arg3[%c32_7, %c1_8] : memref<40x2xf32, #tpu.memory_space<vmem>>, vector<8x1xf32>
    %6 = tpu.iota {dimensions = array<i32: 1>} : vector<4x256xi32>
    %c15_i32 = arith.constant 15 : i32
    %7 = vector.broadcast %c15_i32 : i32 to vector<4x256xi32>
    %8 = arith.andi %6, %7 : vector<4x256xi32>
    %c0_9 = arith.constant 0 : index
    %c0_10 = arith.constant 0 : index
    %c0_11 = arith.constant 0 : index
    %9 = vector.load %arg0[%c0_9, %c0_10, %c0_11] : memref<2x4x368xf32, #tpu.memory_space<vmem>>, vector<1x4x368xf32>
    %10 = vector.shape_cast %9 : vector<1x4x368xf32> to vector<4x368xf32>
    %11 = vector.extract_strided_slice %10 {offsets = [0, 56], sizes = [4, 256], strides = [1, 1]} : vector<4x368xf32> to vector<4x256xf32>
    %12 = vector.extract_strided_slice %10 {offsets = [0, 39], sizes = [4, 256], strides = [1, 1]} : vector<4x368xf32> to vector<4x256xf32>
    %c1_i32 = arith.constant 1 : i32
    %13 = vector.broadcast %c1_i32 : i32 to vector<4x256xi32>
    %14 = arith.cmpi sge, %8, %13 : vector<4x256xi32>
    %cst = arith.constant 0.000000e+00 : f32
    %15 = vector.broadcast %cst : f32 to vector<4x256xf32>
    %16 = arith.select %14, %12, %15 : vector<4x256xi1>, vector<4x256xf32>
    %17 = vector.extract_strided_slice %10 {offsets = [0, 40], sizes = [4, 256], strides = [1, 1]} : vector<4x368xf32> to vector<4x256xf32>
    %18 = vector.extract_strided_slice %10 {offsets = [0, 41], sizes = [4, 256], strides = [1, 1]} : vector<4x368xf32> to vector<4x256xf32>
    %c15_i32_12 = arith.constant 15 : i32
    %19 = vector.broadcast %c15_i32_12 : i32 to vector<4x256xi32>
    %20 = arith.cmpi slt, %8, %19 : vector<4x256xi32>
    %cst_13 = arith.constant 0.000000e+00 : f32
    %21 = vector.broadcast %cst_13 : f32 to vector<4x256xf32>
    %22 = arith.select %20, %18, %21 : vector<4x256xi1>, vector<4x256xf32>
    %23 = vector.extract_strided_slice %10 {offsets = [0, 55], sizes = [4, 256], strides = [1, 1]} : vector<4x368xf32> to vector<4x256xf32>
    %c1_i32_14 = arith.constant 1 : i32
    %24 = vector.broadcast %c1_i32_14 : i32 to vector<4x256xi32>
    %25 = arith.cmpi sge, %8, %24 : vector<4x256xi32>
    %cst_15 = arith.constant 0.000000e+00 : f32
    %26 = vector.broadcast %cst_15 : f32 to vector<4x256xf32>
    %27 = arith.select %25, %23, %26 : vector<4x256xi1>, vector<4x256xf32>
    %28 = vector.extract_strided_slice %10 {offsets = [0, 57], sizes = [4, 256], strides = [1, 1]} : vector<4x368xf32> to vector<4x256xf32>
    %c15_i32_16 = arith.constant 15 : i32
    %29 = vector.broadcast %c15_i32_16 : i32 to vector<4x256xi32>
    %30 = arith.cmpi slt, %8, %29 : vector<4x256xi32>
    %cst_17 = arith.constant 0.000000e+00 : f32
    %31 = vector.broadcast %cst_17 : f32 to vector<4x256xf32>
    %32 = arith.select %30, %28, %31 : vector<4x256xi1>, vector<4x256xf32>
    %33 = vector.extract_strided_slice %10 {offsets = [0, 71], sizes = [4, 256], strides = [1, 1]} : vector<4x368xf32> to vector<4x256xf32>
    %c1_i32_18 = arith.constant 1 : i32
    %34 = vector.broadcast %c1_i32_18 : i32 to vector<4x256xi32>
    %35 = arith.cmpi sge, %8, %34 : vector<4x256xi32>
    %cst_19 = arith.constant 0.000000e+00 : f32
    %36 = vector.broadcast %cst_19 : f32 to vector<4x256xf32>
    %37 = arith.select %35, %33, %36 : vector<4x256xi1>, vector<4x256xf32>
    %38 = vector.extract_strided_slice %10 {offsets = [0, 72], sizes = [4, 256], strides = [1, 1]} : vector<4x368xf32> to vector<4x256xf32>
    %39 = vector.extract_strided_slice %10 {offsets = [0, 73], sizes = [4, 256], strides = [1, 1]} : vector<4x368xf32> to vector<4x256xf32>
    %c15_i32_20 = arith.constant 15 : i32
    %40 = vector.broadcast %c15_i32_20 : i32 to vector<4x256xi32>
    %41 = arith.cmpi slt, %8, %40 : vector<4x256xi32>
    %cst_21 = arith.constant 0.000000e+00 : f32
    %42 = vector.broadcast %cst_21 : f32 to vector<4x256xf32>
    %43 = arith.select %41, %39, %42 : vector<4x256xi1>, vector<4x256xf32>
    %44 = vector.extract_strided_slice %10 {offsets = [0, 22], sizes = [4, 256], strides = [1, 1]} : vector<4x368xf32> to vector<4x256xf32>
    %c2_i32 = arith.constant 2 : i32
    %45 = vector.broadcast %c2_i32 : i32 to vector<4x256xi32>
    %46 = arith.cmpi sge, %8, %45 : vector<4x256xi32>
    %cst_22 = arith.constant 0.000000e+00 : f32
    %47 = vector.broadcast %cst_22 : f32 to vector<4x256xf32>
    %48 = arith.select %46, %44, %47 : vector<4x256xi1>, vector<4x256xf32>
    %49 = vector.extract_strided_slice %10 {offsets = [0, 24], sizes = [4, 256], strides = [1, 1]} : vector<4x368xf32> to vector<4x256xf32>
    %50 = vector.extract_strided_slice %10 {offsets = [0, 26], sizes = [4, 256], strides = [1, 1]} : vector<4x368xf32> to vector<4x256xf32>
    %c14_i32 = arith.constant 14 : i32
    %51 = vector.broadcast %c14_i32 : i32 to vector<4x256xi32>
    %52 = arith.cmpi slt, %8, %51 : vector<4x256xi32>
    %cst_23 = arith.constant 0.000000e+00 : f32
    %53 = vector.broadcast %cst_23 : f32 to vector<4x256xf32>
    %54 = arith.select %52, %50, %53 : vector<4x256xi1>, vector<4x256xf32>
    %55 = vector.extract_strided_slice %10 {offsets = [0, 54], sizes = [4, 256], strides = [1, 1]} : vector<4x368xf32> to vector<4x256xf32>
    %c2_i32_24 = arith.constant 2 : i32
    %56 = vector.broadcast %c2_i32_24 : i32 to vector<4x256xi32>
    %57 = arith.cmpi sge, %8, %56 : vector<4x256xi32>
    %cst_25 = arith.constant 0.000000e+00 : f32
    %58 = vector.broadcast %cst_25 : f32 to vector<4x256xf32>
    %59 = arith.select %57, %55, %58 : vector<4x256xi1>, vector<4x256xf32>
    %60 = vector.extract_strided_slice %10 {offsets = [0, 58], sizes = [4, 256], strides = [1, 1]} : vector<4x368xf32> to vector<4x256xf32>
    %c14_i32_26 = arith.constant 14 : i32
    %61 = vector.broadcast %c14_i32_26 : i32 to vector<4x256xi32>
    %62 = arith.cmpi slt, %8, %61 : vector<4x256xi32>
    %cst_27 = arith.constant 0.000000e+00 : f32
    %63 = vector.broadcast %cst_27 : f32 to vector<4x256xf32>
    %64 = arith.select %62, %60, %63 : vector<4x256xi1>, vector<4x256xf32>
    %65 = vector.extract_strided_slice %10 {offsets = [0, 86], sizes = [4, 256], strides = [1, 1]} : vector<4x368xf32> to vector<4x256xf32>
    %c2_i32_28 = arith.constant 2 : i32
    %66 = vector.broadcast %c2_i32_28 : i32 to vector<4x256xi32>
    %67 = arith.cmpi sge, %8, %66 : vector<4x256xi32>
    %cst_29 = arith.constant 0.000000e+00 : f32
    %68 = vector.broadcast %cst_29 : f32 to vector<4x256xf32>
    %69 = arith.select %67, %65, %68 : vector<4x256xi1>, vector<4x256xf32>
    %70 = vector.extract_strided_slice %10 {offsets = [0, 88], sizes = [4, 256], strides = [1, 1]} : vector<4x368xf32> to vector<4x256xf32>
    %71 = vector.extract_strided_slice %10 {offsets = [0, 90], sizes = [4, 256], strides = [1, 1]} : vector<4x368xf32> to vector<4x256xf32>
    %c14_i32_30 = arith.constant 14 : i32
    %72 = vector.broadcast %c14_i32_30 : i32 to vector<4x256xi32>
    %73 = arith.cmpi slt, %8, %72 : vector<4x256xi32>
    %cst_31 = arith.constant 0.000000e+00 : f32
    %74 = vector.broadcast %cst_31 : f32 to vector<4x256xf32>
    %75 = arith.select %73, %71, %74 : vector<4x256xi1>, vector<4x256xf32>
    %76 = vector.extract_strided_slice %10 {offsets = [0, 5], sizes = [4, 256], strides = [1, 1]} : vector<4x368xf32> to vector<4x256xf32>
    %c3_i32 = arith.constant 3 : i32
    %77 = vector.broadcast %c3_i32 : i32 to vector<4x256xi32>
    %78 = arith.cmpi sge, %8, %77 : vector<4x256xi32>
    %cst_32 = arith.constant 0.000000e+00 : f32
    %79 = vector.broadcast %cst_32 : f32 to vector<4x256xf32>
    %80 = arith.select %78, %76, %79 : vector<4x256xi1>, vector<4x256xf32>
    %81 = vector.extract_strided_slice %10 {offsets = [0, 8], sizes = [4, 256], strides = [1, 1]} : vector<4x368xf32> to vector<4x256xf32>
    %82 = vector.extract_strided_slice %10 {offsets = [0, 11], sizes = [4, 256], strides = [1, 1]} : vector<4x368xf32> to vector<4x256xf32>
    %c13_i32 = arith.constant 13 : i32
    %83 = vector.broadcast %c13_i32 : i32 to vector<4x256xi32>
    %84 = arith.cmpi slt, %8, %83 : vector<4x256xi32>
    %cst_33 = arith.constant 0.000000e+00 : f32
    %85 = vector.broadcast %cst_33 : f32 to vector<4x256xf32>
    %86 = arith.select %84, %82, %85 : vector<4x256xi1>, vector<4x256xf32>
    %87 = vector.extract_strided_slice %10 {offsets = [0, 53], sizes = [4, 256], strides = [1, 1]} : vector<4x368xf32> to vector<4x256xf32>
    %c3_i32_34 = arith.constant 3 : i32
    %88 = vector.broadcast %c3_i32_34 : i32 to vector<4x256xi32>
    %89 = arith.cmpi sge, %8, %88 : vector<4x256xi32>
    %cst_35 = arith.constant 0.000000e+00 : f32
    %90 = vector.broadcast %cst_35 : f32 to vector<4x256xf32>
    %91 = arith.select %89, %87, %90 : vector<4x256xi1>, vector<4x256xf32>
    %92 = vector.extract_strided_slice %10 {offsets = [0, 59], sizes = [4, 256], strides = [1, 1]} : vector<4x368xf32> to vector<4x256xf32>
    %c13_i32_36 = arith.constant 13 : i32
    %93 = vector.broadcast %c13_i32_36 : i32 to vector<4x256xi32>
    %94 = arith.cmpi slt, %8, %93 : vector<4x256xi32>
    %cst_37 = arith.constant 0.000000e+00 : f32
    %95 = vector.broadcast %cst_37 : f32 to vector<4x256xf32>
    %96 = arith.select %94, %92, %95 : vector<4x256xi1>, vector<4x256xf32>
    %97 = vector.extract_strided_slice %10 {offsets = [0, 101], sizes = [4, 256], strides = [1, 1]} : vector<4x368xf32> to vector<4x256xf32>
    %c3_i32_38 = arith.constant 3 : i32
    %98 = vector.broadcast %c3_i32_38 : i32 to vector<4x256xi32>
    %99 = arith.cmpi sge, %8, %98 : vector<4x256xi32>
    %cst_39 = arith.constant 0.000000e+00 : f32
    %100 = vector.broadcast %cst_39 : f32 to vector<4x256xf32>
    %101 = arith.select %99, %97, %100 : vector<4x256xi1>, vector<4x256xf32>
    %102 = vector.extract_strided_slice %10 {offsets = [0, 104], sizes = [4, 256], strides = [1, 1]} : vector<4x368xf32> to vector<4x256xf32>
    %103 = vector.extract_strided_slice %10 {offsets = [0, 107], sizes = [4, 256], strides = [1, 1]} : vector<4x368xf32> to vector<4x256xf32>
    %c13_i32_40 = arith.constant 13 : i32
    %104 = vector.broadcast %c13_i32_40 : i32 to vector<4x256xi32>
    %105 = arith.cmpi slt, %8, %104 : vector<4x256xi32>
    %cst_41 = arith.constant 0.000000e+00 : f32
    %106 = vector.broadcast %cst_41 : f32 to vector<4x256xf32>
    %107 = arith.select %105, %103, %106 : vector<4x256xi1>, vector<4x256xf32>
    %108 = tpu.concatenate %11, %16, %17, %22, %27, %32, %37, %38, %43, %48, %49, %54, %59, %64, %69, %70 in 0 : vector<4x256xf32>, vector<4x256xf32>, vector<4x256xf32>, vector<4x256xf32>, vector<4x256xf32>, vector<4x256xf32>, vector<4x256xf32>, vector<4x256xf32>, vector<4x256xf32>, vector<4x256xf32>, vector<4x256xf32>, vector<4x256xf32>, vector<4x256xf32>, vector<4x256xf32>, vector<4x256xf32>, vector<4x256xf32> -> vector<64x256xf32>
    %109 = tpu.concatenate %75, %80, %81, %86, %91, %96, %101, %102, %107 in 0 : vector<4x256xf32>, vector<4x256xf32>, vector<4x256xf32>, vector<4x256xf32>, vector<4x256xf32>, vector<4x256xf32>, vector<4x256xf32>, vector<4x256xf32>, vector<4x256xf32> -> vector<36x256xf32>
    %110 = tpu.concatenate %108, %109 in 0 : vector<64x256xf32>, vector<36x256xf32> -> vector<100x256xf32>
    %cst_42 = arith.constant dense<0.000000e+00> : vector<32x256xf32>
    %111 = tpu.matmul %0, %110, %cst_42 {dimension_numbers = #tpu.dot_dimension_numbers<[1], [0], [0], [1], [0, 0, 1, 1], [], []>} : vector<32x100xf32>, vector<100x256xf32>, vector<32x256xf32> -> vector<32x256xf32>
    %112 = vector.broadcast %2 : vector<32x1xf32> to vector<32x256xf32>
    %113 = arith.mulf %111, %112 : vector<32x256xf32>
    %114 = vector.broadcast %3 : vector<32x1xf32> to vector<32x256xf32>
    %115 = arith.addf %113, %114 : vector<32x256xf32>
    %cst_43 = arith.constant 0.000000e+00 : f32
    %116 = vector.broadcast %cst_43 : f32 to vector<32x256xf32>
    %117 = arith.maximumf %115, %116 : vector<32x256xf32>
    %cst_44 = arith.constant dense<0.000000e+00> : vector<8x256xf32>
    %118 = tpu.matmul %1, %117, %cst_44 {dimension_numbers = #tpu.dot_dimension_numbers<[1], [0], [0], [1], [0, 0, 1, 1], [], []>} : vector<8x32xf32>, vector<32x256xf32>, vector<8x256xf32> -> vector<8x256xf32>
    %119 = vector.broadcast %4 : vector<8x1xf32> to vector<8x256xf32>
    %120 = arith.mulf %118, %119 : vector<8x256xf32>
    %121 = vector.broadcast %5 : vector<8x1xf32> to vector<8x256xf32>
    %122 = arith.addf %120, %121 : vector<8x256xf32>
    %cst_45 = arith.constant 0.000000e+00 : f32
    %123 = vector.broadcast %cst_45 : f32 to vector<8x256xf32>
    %124 = arith.maximumf %122, %123 : vector<8x256xf32>
    %c0_46 = arith.constant 0 : index
    %c0_47 = arith.constant 0 : index
    %c0_48 = arith.constant 0 : index
    %125 = vector.load %arg4[%c0_46, %c0_47, %c0_48] : memref<2x8x256xf32, #tpu.memory_space<vmem>>, vector<1x8x256xf32>
    %126 = vector.shape_cast %125 : vector<1x8x256xf32> to vector<8x256xf32>
    %127 = vector.shape_cast %124 : vector<8x256xf32> to vector<1x8x256xf32>
    tpu.vector_store %arg4[%c0_46, %c0_47, %c0_48], %127 {strides = array<i32>} : memref<2x8x256xf32, #tpu.memory_space<vmem>>, vector<1x8x256xf32>,
    %c1_49 = arith.constant 1 : index
    %c0_50 = arith.constant 0 : index
    %c0_51 = arith.constant 0 : index
    %128 = vector.load %arg0[%c1_49, %c0_50, %c0_51] : memref<2x4x368xf32, #tpu.memory_space<vmem>>, vector<1x4x368xf32>
    %129 = vector.shape_cast %128 : vector<1x4x368xf32> to vector<4x368xf32>
    %130 = vector.extract_strided_slice %129 {offsets = [0, 56], sizes = [4, 256], strides = [1, 1]} : vector<4x368xf32> to vector<4x256xf32>
    %131 = vector.extract_strided_slice %129 {offsets = [0, 39], sizes = [4, 256], strides = [1, 1]} : vector<4x368xf32> to vector<4x256xf32>
    %c1_i32_52 = arith.constant 1 : i32
    %132 = vector.broadcast %c1_i32_52 : i32 to vector<4x256xi32>
    %133 = arith.cmpi sge, %8, %132 : vector<4x256xi32>
    %cst_53 = arith.constant 0.000000e+00 : f32
    %134 = vector.broadcast %cst_53 : f32 to vector<4x256xf32>
    %135 = arith.select %133, %131, %134 : vector<4x256xi1>, vector<4x256xf32>
    %136 = vector.extract_strided_slice %129 {offsets = [0, 40], sizes = [4, 256], strides = [1, 1]} : vector<4x368xf32> to vector<4x256xf32>
    %137 = vector.extract_strided_slice %129 {offsets = [0, 41], sizes = [4, 256], strides = [1, 1]} : vector<4x368xf32> to vector<4x256xf32>
    %c15_i32_54 = arith.constant 15 : i32
    %138 = vector.broadcast %c15_i32_54 : i32 to vector<4x256xi32>
    %139 = arith.cmpi slt, %8, %138 : vector<4x256xi32>
    %cst_55 = arith.constant 0.000000e+00 : f32
    %140 = vector.broadcast %cst_55 : f32 to vector<4x256xf32>
    %141 = arith.select %139, %137, %140 : vector<4x256xi1>, vector<4x256xf32>
    %142 = vector.extract_strided_slice %129 {offsets = [0, 55], sizes = [4, 256], strides = [1, 1]} : vector<4x368xf32> to vector<4x256xf32>
    %c1_i32_56 = arith.constant 1 : i32
    %143 = vector.broadcast %c1_i32_56 : i32 to vector<4x256xi32>
    %144 = arith.cmpi sge, %8, %143 : vector<4x256xi32>
    %cst_57 = arith.constant 0.000000e+00 : f32
    %145 = vector.broadcast %cst_57 : f32 to vector<4x256xf32>
    %146 = arith.select %144, %142, %145 : vector<4x256xi1>, vector<4x256xf32>
    %147 = vector.extract_strided_slice %129 {offsets = [0, 57], sizes = [4, 256], strides = [1, 1]} : vector<4x368xf32> to vector<4x256xf32>
    %c15_i32_58 = arith.constant 15 : i32
    %148 = vector.broadcast %c15_i32_58 : i32 to vector<4x256xi32>
    %149 = arith.cmpi slt, %8, %148 : vector<4x256xi32>
    %cst_59 = arith.constant 0.000000e+00 : f32
    %150 = vector.broadcast %cst_59 : f32 to vector<4x256xf32>
    %151 = arith.select %149, %147, %150 : vector<4x256xi1>, vector<4x256xf32>
    %152 = vector.extract_strided_slice %129 {offsets = [0, 71], sizes = [4, 256], strides = [1, 1]} : vector<4x368xf32> to vector<4x256xf32>
    %c1_i32_60 = arith.constant 1 : i32
    %153 = vector.broadcast %c1_i32_60 : i32 to vector<4x256xi32>
    %154 = arith.cmpi sge, %8, %153 : vector<4x256xi32>
    %cst_61 = arith.constant 0.000000e+00 : f32
    %155 = vector.broadcast %cst_61 : f32 to vector<4x256xf32>
    %156 = arith.select %154, %152, %155 : vector<4x256xi1>, vector<4x256xf32>
    %157 = vector.extract_strided_slice %129 {offsets = [0, 72], sizes = [4, 256], strides = [1, 1]} : vector<4x368xf32> to vector<4x256xf32>
    %158 = vector.extract_strided_slice %129 {offsets = [0, 73], sizes = [4, 256], strides = [1, 1]} : vector<4x368xf32> to vector<4x256xf32>
    %c15_i32_62 = arith.constant 15 : i32
    %159 = vector.broadcast %c15_i32_62 : i32 to vector<4x256xi32>
    %160 = arith.cmpi slt, %8, %159 : vector<4x256xi32>
    %cst_63 = arith.constant 0.000000e+00 : f32
    %161 = vector.broadcast %cst_63 : f32 to vector<4x256xf32>
    %162 = arith.select %160, %158, %161 : vector<4x256xi1>, vector<4x256xf32>
    %163 = vector.extract_strided_slice %129 {offsets = [0, 22], sizes = [4, 256], strides = [1, 1]} : vector<4x368xf32> to vector<4x256xf32>
    %c2_i32_64 = arith.constant 2 : i32
    %164 = vector.broadcast %c2_i32_64 : i32 to vector<4x256xi32>
    %165 = arith.cmpi sge, %8, %164 : vector<4x256xi32>
    %cst_65 = arith.constant 0.000000e+00 : f32
    %166 = vector.broadcast %cst_65 : f32 to vector<4x256xf32>
    %167 = arith.select %165, %163, %166 : vector<4x256xi1>, vector<4x256xf32>
    %168 = vector.extract_strided_slice %129 {offsets = [0, 24], sizes = [4, 256], strides = [1, 1]} : vector<4x368xf32> to vector<4x256xf32>
    %169 = vector.extract_strided_slice %129 {offsets = [0, 26], sizes = [4, 256], strides = [1, 1]} : vector<4x368xf32> to vector<4x256xf32>
    %c14_i32_66 = arith.constant 14 : i32
    %170 = vector.broadcast %c14_i32_66 : i32 to vector<4x256xi32>
    %171 = arith.cmpi slt, %8, %170 : vector<4x256xi32>
    %cst_67 = arith.constant 0.000000e+00 : f32
    %172 = vector.broadcast %cst_67 : f32 to vector<4x256xf32>
    %173 = arith.select %171, %169, %172 : vector<4x256xi1>, vector<4x256xf32>
    %174 = vector.extract_strided_slice %129 {offsets = [0, 54], sizes = [4, 256], strides = [1, 1]} : vector<4x368xf32> to vector<4x256xf32>
    %c2_i32_68 = arith.constant 2 : i32
    %175 = vector.broadcast %c2_i32_68 : i32 to vector<4x256xi32>
    %176 = arith.cmpi sge, %8, %175 : vector<4x256xi32>
    %cst_69 = arith.constant 0.000000e+00 : f32
    %177 = vector.broadcast %cst_69 : f32 to vector<4x256xf32>
    %178 = arith.select %176, %174, %177 : vector<4x256xi1>, vector<4x256xf32>
    %179 = vector.extract_strided_slice %129 {offsets = [0, 58], sizes = [4, 256], strides = [1, 1]} : vector<4x368xf32> to vector<4x256xf32>
    %c14_i32_70 = arith.constant 14 : i32
    %180 = vector.broadcast %c14_i32_70 : i32 to vector<4x256xi32>
    %181 = arith.cmpi slt, %8, %180 : vector<4x256xi32>
    %cst_71 = arith.constant 0.000000e+00 : f32
    %182 = vector.broadcast %cst_71 : f32 to vector<4x256xf32>
    %183 = arith.select %181, %179, %182 : vector<4x256xi1>, vector<4x256xf32>
    %184 = vector.extract_strided_slice %129 {offsets = [0, 86], sizes = [4, 256], strides = [1, 1]} : vector<4x368xf32> to vector<4x256xf32>
    %c2_i32_72 = arith.constant 2 : i32
    %185 = vector.broadcast %c2_i32_72 : i32 to vector<4x256xi32>
    %186 = arith.cmpi sge, %8, %185 : vector<4x256xi32>
    %cst_73 = arith.constant 0.000000e+00 : f32
    %187 = vector.broadcast %cst_73 : f32 to vector<4x256xf32>
    %188 = arith.select %186, %184, %187 : vector<4x256xi1>, vector<4x256xf32>
    %189 = vector.extract_strided_slice %129 {offsets = [0, 88], sizes = [4, 256], strides = [1, 1]} : vector<4x368xf32> to vector<4x256xf32>
    %190 = vector.extract_strided_slice %129 {offsets = [0, 90], sizes = [4, 256], strides = [1, 1]} : vector<4x368xf32> to vector<4x256xf32>
    %c14_i32_74 = arith.constant 14 : i32
    %191 = vector.broadcast %c14_i32_74 : i32 to vector<4x256xi32>
    %192 = arith.cmpi slt, %8, %191 : vector<4x256xi32>
    %cst_75 = arith.constant 0.000000e+00 : f32
    %193 = vector.broadcast %cst_75 : f32 to vector<4x256xf32>
    %194 = arith.select %192, %190, %193 : vector<4x256xi1>, vector<4x256xf32>
    %195 = vector.extract_strided_slice %129 {offsets = [0, 5], sizes = [4, 256], strides = [1, 1]} : vector<4x368xf32> to vector<4x256xf32>
    %c3_i32_76 = arith.constant 3 : i32
    %196 = vector.broadcast %c3_i32_76 : i32 to vector<4x256xi32>
    %197 = arith.cmpi sge, %8, %196 : vector<4x256xi32>
    %cst_77 = arith.constant 0.000000e+00 : f32
    %198 = vector.broadcast %cst_77 : f32 to vector<4x256xf32>
    %199 = arith.select %197, %195, %198 : vector<4x256xi1>, vector<4x256xf32>
    %200 = vector.extract_strided_slice %129 {offsets = [0, 8], sizes = [4, 256], strides = [1, 1]} : vector<4x368xf32> to vector<4x256xf32>
    %201 = vector.extract_strided_slice %129 {offsets = [0, 11], sizes = [4, 256], strides = [1, 1]} : vector<4x368xf32> to vector<4x256xf32>
    %c13_i32_78 = arith.constant 13 : i32
    %202 = vector.broadcast %c13_i32_78 : i32 to vector<4x256xi32>
    %203 = arith.cmpi slt, %8, %202 : vector<4x256xi32>
    %cst_79 = arith.constant 0.000000e+00 : f32
    %204 = vector.broadcast %cst_79 : f32 to vector<4x256xf32>
    %205 = arith.select %203, %201, %204 : vector<4x256xi1>, vector<4x256xf32>
    %206 = vector.extract_strided_slice %129 {offsets = [0, 53], sizes = [4, 256], strides = [1, 1]} : vector<4x368xf32> to vector<4x256xf32>
    %c3_i32_80 = arith.constant 3 : i32
    %207 = vector.broadcast %c3_i32_80 : i32 to vector<4x256xi32>
    %208 = arith.cmpi sge, %8, %207 : vector<4x256xi32>
    %cst_81 = arith.constant 0.000000e+00 : f32
    %209 = vector.broadcast %cst_81 : f32 to vector<4x256xf32>
    %210 = arith.select %208, %206, %209 : vector<4x256xi1>, vector<4x256xf32>
    %211 = vector.extract_strided_slice %129 {offsets = [0, 59], sizes = [4, 256], strides = [1, 1]} : vector<4x368xf32> to vector<4x256xf32>
    %c13_i32_82 = arith.constant 13 : i32
    %212 = vector.broadcast %c13_i32_82 : i32 to vector<4x256xi32>
    %213 = arith.cmpi slt, %8, %212 : vector<4x256xi32>
    %cst_83 = arith.constant 0.000000e+00 : f32
    %214 = vector.broadcast %cst_83 : f32 to vector<4x256xf32>
    %215 = arith.select %213, %211, %214 : vector<4x256xi1>, vector<4x256xf32>
    %216 = vector.extract_strided_slice %129 {offsets = [0, 101], sizes = [4, 256], strides = [1, 1]} : vector<4x368xf32> to vector<4x256xf32>
    %c3_i32_84 = arith.constant 3 : i32
    %217 = vector.broadcast %c3_i32_84 : i32 to vector<4x256xi32>
    %218 = arith.cmpi sge, %8, %217 : vector<4x256xi32>
    %cst_85 = arith.constant 0.000000e+00 : f32
    %219 = vector.broadcast %cst_85 : f32 to vector<4x256xf32>
    %220 = arith.select %218, %216, %219 : vector<4x256xi1>, vector<4x256xf32>
    %221 = vector.extract_strided_slice %129 {offsets = [0, 104], sizes = [4, 256], strides = [1, 1]} : vector<4x368xf32> to vector<4x256xf32>
    %222 = vector.extract_strided_slice %129 {offsets = [0, 107], sizes = [4, 256], strides = [1, 1]} : vector<4x368xf32> to vector<4x256xf32>
    %c13_i32_86 = arith.constant 13 : i32
    %223 = vector.broadcast %c13_i32_86 : i32 to vector<4x256xi32>
    %224 = arith.cmpi slt, %8, %223 : vector<4x256xi32>
    %cst_87 = arith.constant 0.000000e+00 : f32
    %225 = vector.broadcast %cst_87 : f32 to vector<4x256xf32>
    %226 = arith.select %224, %222, %225 : vector<4x256xi1>, vector<4x256xf32>
    %227 = tpu.concatenate %130, %135, %136, %141, %146, %151, %156, %157, %162, %167, %168, %173, %178, %183, %188, %189 in 0 : vector<4x256xf32>, vector<4x256xf32>, vector<4x256xf32>, vector<4x256xf32>, vector<4x256xf32>, vector<4x256xf32>, vector<4x256xf32>, vector<4x256xf32>, vector<4x256xf32>, vector<4x256xf32>, vector<4x256xf32>, vector<4x256xf32>, vector<4x256xf32>, vector<4x256xf32>, vector<4x256xf32>, vector<4x256xf32> -> vector<64x256xf32>
    %228 = tpu.concatenate %194, %199, %200, %205, %210, %215, %220, %221, %226 in 0 : vector<4x256xf32>, vector<4x256xf32>, vector<4x256xf32>, vector<4x256xf32>, vector<4x256xf32>, vector<4x256xf32>, vector<4x256xf32>, vector<4x256xf32>, vector<4x256xf32> -> vector<36x256xf32>
    %229 = tpu.concatenate %227, %228 in 0 : vector<64x256xf32>, vector<36x256xf32> -> vector<100x256xf32>
    %cst_88 = arith.constant dense<0.000000e+00> : vector<32x256xf32>
    %230 = tpu.matmul %0, %229, %cst_88 {dimension_numbers = #tpu.dot_dimension_numbers<[1], [0], [0], [1], [0, 0, 1, 1], [], []>} : vector<32x100xf32>, vector<100x256xf32>, vector<32x256xf32> -> vector<32x256xf32>
    %231 = vector.broadcast %2 : vector<32x1xf32> to vector<32x256xf32>
    %232 = arith.mulf %230, %231 : vector<32x256xf32>
    %233 = vector.broadcast %3 : vector<32x1xf32> to vector<32x256xf32>
    %234 = arith.addf %232, %233 : vector<32x256xf32>
    %cst_89 = arith.constant 0.000000e+00 : f32
    %235 = vector.broadcast %cst_89 : f32 to vector<32x256xf32>
    %236 = arith.maximumf %234, %235 : vector<32x256xf32>
    %cst_90 = arith.constant dense<0.000000e+00> : vector<8x256xf32>
    %237 = tpu.matmul %1, %236, %cst_90 {dimension_numbers = #tpu.dot_dimension_numbers<[1], [0], [0], [1], [0, 0, 1, 1], [], []>} : vector<8x32xf32>, vector<32x256xf32>, vector<8x256xf32> -> vector<8x256xf32>
    %238 = vector.broadcast %4 : vector<8x1xf32> to vector<8x256xf32>
    %239 = arith.mulf %237, %238 : vector<8x256xf32>
    %240 = vector.broadcast %5 : vector<8x1xf32> to vector<8x256xf32>
    %241 = arith.addf %239, %240 : vector<8x256xf32>
    %cst_91 = arith.constant 0.000000e+00 : f32
    %242 = vector.broadcast %cst_91 : f32 to vector<8x256xf32>
    %243 = arith.maximumf %241, %242 : vector<8x256xf32>
    %c1_92 = arith.constant 1 : index
    %c0_93 = arith.constant 0 : index
    %c0_94 = arith.constant 0 : index
    %244 = vector.load %arg4[%c1_92, %c0_93, %c0_94] : memref<2x8x256xf32, #tpu.memory_space<vmem>>, vector<1x8x256xf32>
    %245 = vector.shape_cast %244 : vector<1x8x256xf32> to vector<8x256xf32>
    %246 = vector.shape_cast %243 : vector<8x256xf32> to vector<1x8x256xf32>
    tpu.vector_store %arg4[%c1_92, %c0_93, %c0_94], %246 {strides = array<i32>} : memref<2x8x256xf32, #tpu.memory_space<vmem>>, vector<1x8x256xf32>,
    return
  }
}

</mosaic_0001>

<llo_original>
// kernel: aspp_forward.1
$region0: #{aspp_forward.1}
  #allocation0 [shape = 'u32[]', space=smem, size = 0x4, offset = 0x4, fixed_abs, tag = 'smem constant byte address 0x4 - core index']
  #allocation1 [shape = 'u32[72,128]{1,0:T(1,128)}', space=vmem, size = 0x9000, scoped, tag = 'internal scratch']
  %s0 = inlined_call_operand.vmem [shape: f32[2,4,368], index: 0, kind: input, shape index: {}]
  %s1 = inlined_call_operand.vmem [shape: f32[32,100], index: 1, kind: input, shape index: {}]
  %s2 = inlined_call_operand.vmem [shape: f32[8,32], index: 2, kind: input, shape index: {}]
  %s3 = inlined_call_operand.vmem [shape: f32[40,2], index: 3, kind: input, shape index: {}]
  %s4 = inlined_call_operand.vmem [shape: f32[2,8,256], index: 4, kind: output, shape index: {}]
  %s5 = sld [smem:[#allocation0]]
  $region26: #{aspp_forward.1} parent=0
    _
  %s7 = ssub.s32 1, %s5
  %s8 = scalar_select 0, %s7, %s5
  // Predicated region
  $region2: #{aspp_forward.1} parent=0 // pred_check
    _
  $region3: #{aspp_forward.1} parent=0 // pred_check_branch
    %10 = sbr.rel (0) target = $region5
  $region4: #{aspp_forward.1} parent=0 // pred_region
    _
  $region5: #{aspp_forward.1} parent=0 // pred_fallthru
    _
  // Predicated region
  $region6: #{aspp_forward.1} parent=0 // pred_check
    _
  $region7: #{aspp_forward.1} parent=0 // pred_check_branch
    %12 = sbr.rel (0) target = $region9
  $region8: #{aspp_forward.1} parent=0 // pred_region
    _
  $region9: #{aspp_forward.1} parent=0 // pred_fallthru
    _
  // Predicated region
  $region10: #{aspp_forward.1} parent=0 // pred_check
    _
  $region11: #{aspp_forward.1} parent=0 // pred_check_branch
    %14 = sbr.rel (0) target = $region13
  $region12: #{aspp_forward.1} parent=0 // pred_region
    _
  $region13: #{aspp_forward.1} parent=0 // pred_fallthru
    _
  // Predicated region
  $region14: #{aspp_forward.1} parent=0 // pred_check
    _
  $region15: #{aspp_forward.1} parent=0 // pred_check_branch
    %16 = sbr.rel (0) target = $region17
  $region16: #{aspp_forward.1} parent=0 // pred_region
    _
  $region17: #{aspp_forward.1} parent=0 // pred_fallthru
    _
  %v17 = vld [vmem:[%s1] sm:$0xff]
  %v18 = vld [vmem:[%s1 + $0x8] sm:$0xff]
  %v19 = vld [vmem:[%s1 + $0x10] sm:$0xff]
  %v20 = vld [vmem:[%s1 + $0x18] sm:$0xff]
  %v21 = vld [vmem:[%s2] sm:$0xff]
  %v22 = vld [vmem:[%s3] sm:$0xff]
  %v23 = vld [vmem:[%s3 + $0x8] sm:$0xff]
  %v24 = vld [vmem:[%s3 + $0x10] sm:$0xff]
  %v25 = vld [vmem:[%s3 + $0x18] sm:$0xff]
  %v26 = vld [vmem:[%s3 + $0x20] sm:$0xff]
  %v27 = vlaneseq
  %v28 = vand.u32 %v27, 127
  %v29 = vadd.s32 %v28, 128
  %v30 = vand.u32 %v28, 15
  %v31 = vand.u32 %v29, 15
  %v32 = vld [vmem:[%s0] sm:$0xff]
  %v33 = vld [vmem:[%s0 + $0x8] sm:$0xf]
  %vm34 = vcmp.ge.s32.totalorder %v30, 1
  %vm35 = vcmp.ge.s32.totalorder %v31, 1
  %38 = vst [vmem:[#allocation1] ss:$2 sm:$0xff] %v32
  %s39 = scalar_lea.vmem [#allocation1], 16
  %40 = vst [vmem:[%s39] ss:$2 sm:$0xff] %v33
  %v41 = vld.sshfl [vmem:[#allocation1] sm:$0xff pattern:$0x75316420]
  %v42 = vld.sshfl [vmem:[#allocation1 + $0x8] sm:$0xff pattern:$0x75316420]
  %v43 = vld.sshfl [vmem:[#allocation1 + $0x10] sm:$0xff pattern:$0x75316420]
  %44 = vrot.lane.b32.xlu0 %v41, 89
  %v45 = vpop.permute.xlu0 %44
  %46 = vrot.lane.b32.xlu0 %v42, 89
  %v47 = vpop.permute.xlu0 %46
  %48 = vrot.lane.b32.xlu0 %v43, 89
  %v49 = vpop.permute.xlu0 %48
  %vm50 = vcmask 728064
  %v51 = vsel %vm50, %v45, %v47
  %v52 = vsel %vm50, %v47, %v49
  %v55 = vsel %vm34, %v51, 0.0
  %v56 = vsel %vm35, %v52, 0.0
  %vm57 = vcmp.lt.s32.totalorder %v30, 15
  %vm58 = vcmp.lt.s32.totalorder %v31, 15
  %59 = vst [vmem:[#allocation1] ss:$2 sm:$0xff] %v32
  %s60 = scalar_lea.vmem [#allocation1], 16
  %61 = vst [vmem:[%s60] ss:$2 sm:$0xff] %v33
  %v62 = vld.sshfl [vmem:[#allocation1] sm:$0xff pattern:$0x75316420]
  %v63 = vld.sshfl [vmem:[#allocation1 + $0x8] sm:$0xff pattern:$0x75316420]
  %v64 = vld.sshfl [vmem:[#allocation1 + $0x10] sm:$0xff pattern:$0x75316420]
  %65 = vrot.lane.b32.xlu0 %v62, 87
  %v66 = vpop.permute.xlu0 %65
  %67 = vrot.lane.b32.xlu0 %v63, 87
  %v68 = vpop.permute.xlu0 %67
  %69 = vrot.lane.b32.xlu0 %v64, 87
  %v70 = vpop.permute.xlu0 %69
  %vm71 = vcmask 711680
  %v72 = vsel %vm71, %v66, %v68
  %v73 = vsel %vm71, %v68, %v70
  %v76 = vsel %vm57, %v72, 0.0
  %v77 = vsel %vm58, %v73, 0.0
  %78 = vst [vmem:[#allocation1] ss:$2 sm:$0xff] %v32
  %s79 = scalar_lea.vmem [#allocation1], 16
  %80 = vst [vmem:[%s79] ss:$2 sm:$0xff] %v33
  %v81 = vld.sshfl [vmem:[#allocation1] sm:$0xff pattern:$0x75316420]
  %v82 = vld.sshfl [vmem:[#allocation1 + $0x8] sm:$0xff pattern:$0x75316420]
  %v83 = vld.sshfl [vmem:[#allocation1 + $0x10] sm:$0xff pattern:$0x75316420]
  %84 = vrot.lane.b32.xlu0 %v81, 73
  %v85 = vpop.permute.xlu0 %84
  %86 = vrot.lane.b32.xlu0 %v82, 73
  %v87 = vpop.permute.xlu0 %86
  %88 = vrot.lane.b32.xlu0 %v83, 73
  %v89 = vpop.permute.xlu0 %88
  %vm90 = vcmask 596992
  %v91 = vsel %vm90, %v85, %v87
  %v92 = vsel %vm90, %v87, %v89
  %v95 = vsel %vm34, %v91, 0.0
  %v96 = vsel %vm35, %v92, 0.0
  %97 = vst [vmem:[#allocation1] ss:$2 sm:$0xff] %v32
  %s98 = scalar_lea.vmem [#allocation1], 16
  %99 = vst [vmem:[%s98] ss:$2 sm:$0xff] %v33
  %v100 = vld.sshfl [vmem:[#allocation1] sm:$0xff pattern:$0x75316420]
  %v101 = vld.sshfl [vmem:[#allocation1 + $0x8] sm:$0xff pattern:$0x75316420]
  %v102 = vld.sshfl [vmem:[#allocation1 + $0x10] sm:$0xff pattern:$0x75316420]
  %103 = vrot.lane.b32.xlu0 %v100, 71
  %v104 = vpop.permute.xlu0 %103
  %105 = vrot.lane.b32.xlu0 %v101, 71
  %v106 = vpop.permute.xlu0 %105
  %107 = vrot.lane.b32.xlu0 %v102, 71
  %v108 = vpop.permute.xlu0 %107
  %vm109 = vcmask 580608
  %v110 = vsel %vm109, %v104, %v106
  %v111 = vsel %vm109, %v106, %v108
  %v114 = vsel %vm57, %v110, 0.0
  %v115 = vsel %vm58, %v111, 0.0
  %116 = vst [vmem:[#allocation1] ss:$2 sm:$0xff] %v32
  %s117 = scalar_lea.vmem [#allocation1], 16
  %118 = vst [vmem:[%s117] ss:$2 sm:$0xff] %v33
  %v119 = vld.sshfl [vmem:[#allocation1] sm:$0xff pattern:$0x75316420]
  %v120 = vld.sshfl [vmem:[#allocation1 + $0x8] sm:$0xff pattern:$0x75316420]
  %v121 = vld.sshfl [vmem:[#allocation1 + $0x10] sm:$0xff pattern:$0x75316420]
  %122 = vrot.lane.b32.xlu0 %v119, 57
  %v123 = vpop.permute.xlu0 %122
  %124 = vrot.lane.b32.xlu0 %v120, 57
  %v125 = vpop.permute.xlu0 %124
  %126 = vrot.lane.b32.xlu0 %v121, 57
  %v127 = vpop.permute.xlu0 %126
  %vm128 = vcmask 465920
  %v129 = vsel %vm128, %v123, %v125
  %v130 = vsel %vm128, %v125, %v127
  %v133 = vsel %vm34, %v129, 0.0
  %v134 = vsel %vm35, %v130, 0.0
  %135 = vst [vmem:[#allocation1] ss:$2 sm:$0xff] %v32
  %s136 = scalar_lea.vmem [#allocation1], 16
  %137 = vst [vmem:[%s136] ss:$2 sm:$0xff] %v33
  %v138 = vld.sshfl [vmem:[#allocation1] sm:$0xff pattern:$0x75316420]
  %v139 = vld.sshfl [vmem:[#allocation1 + $0x8] sm:$0xff pattern:$0x75316420]
  %v140 = vld.sshfl [vmem:[#allocation1 + $0x10] sm:$0xff pattern:$0x75316420]
  %141 = vrot.lane.b32.xlu0 %v138, 55
  %v142 = vpop.permute.xlu0 %141
  %143 = vrot.lane.b32.xlu0 %v139, 55
  %v144 = vpop.permute.xlu0 %143
  %145 = vrot.lane.b32.xlu0 %v140, 55
  %v146 = vpop.permute.xlu0 %145
  %vm147 = vcmask 449536
  %v148 = vsel %vm147, %v142, %v144
  %v149 = vsel %vm147, %v144, %v146
  %v152 = vsel %vm57, %v148, 0.0
  %v153 = vsel %vm58, %v149, 0.0
  %vm154 = vcmp.ge.s32.totalorder %v30, 2
  %vm155 = vcmp.ge.s32.totalorder %v31, 2
  %156 = vst [vmem:[#allocation1] ss:$2 sm:$0xff] %v32
  %s157 = scalar_lea.vmem [#allocation1], 16
  %158 = vst [vmem:[%s157] ss:$2 sm:$0xff] %v33
  %v159 = vld.sshfl [vmem:[#allocation1] sm:$0xff pattern:$0x75316420]
  %v160 = vld.sshfl [vmem:[#allocation1 + $0x8] sm:$0xff pattern:$0x75316420]
  %v161 = vld.sshfl [vmem:[#allocation1 + $0x10] sm:$0xff pattern:$0x75316420]
  %162 = vrot.lane.b32.xlu0 %v159, 106
  %v163 = vpop.permute.xlu0 %162
  %164 = vrot.lane.b32.xlu0 %v160, 106
  %v165 = vpop.permute.xlu0 %164
  %166 = vrot.lane.b32.xlu0 %v161, 106
  %v167 = vpop.permute.xlu0 %166
  %vm168 = vcmask 867328
  %v169 = vsel %vm168, %v163, %v165
  %v170 = vsel %vm168, %v165, %v167
  %v173 = vsel %vm154, %v169, 0.0
  %v174 = vsel %vm155, %v170, 0.0
  %vm175 = vcmp.lt.s32.totalorder %v30, 14
  %vm176 = vcmp.lt.s32.totalorder %v31, 14
  %177 = vst [vmem:[#allocation1] ss:$2 sm:$0xff] %v32
  %s178 = scalar_lea.vmem [#allocation1], 16
  %179 = vst [vmem:[%s178] ss:$2 sm:$0xff] %v33
  %v180 = vld.sshfl [vmem:[#allocation1] sm:$0xff pattern:$0x75316420]
  %v181 = vld.sshfl [vmem:[#allocation1 + $0x8] sm:$0xff pattern:$0x75316420]
  %v182 = vld.sshfl [vmem:[#allocation1 + $0x10] sm:$0xff pattern:$0x75316420]
  %183 = vrot.lane.b32.xlu0 %v180, 102
  %v184 = vpop.permute.xlu0 %183
  %185 = vrot.lane.b32.xlu0 %v181, 102
  %v186 = vpop.permute.xlu0 %185
  %187 = vrot.lane.b32.xlu0 %v182, 102
  %v188 = vpop.permute.xlu0 %187
  %vm189 = vcmask 834560
  %v190 = vsel %vm189, %v184, %v186
  %v191 = vsel %vm189, %v186, %v188
  %v194 = vsel %vm175, %v190, 0.0
  %v195 = vsel %vm176, %v191, 0.0
  %196 = vst [vmem:[#allocation1] ss:$2 sm:$0xff] %v32
  %s197 = scalar_lea.vmem [#allocation1], 16
  %198 = vst [vmem:[%s197] ss:$2 sm:$0xff] %v33
  %v199 = vld.sshfl [vmem:[#allocation1] sm:$0xff pattern:$0x75316420]
  %v200 = vld.sshfl [vmem:[#allocation1 + $0x8] sm:$0xff pattern:$0x75316420]
  %v201 = vld.sshfl [vmem:[#allocation1 + $0x10] sm:$0xff pattern:$0x75316420]
  %202 = vrot.lane.b32.xlu0 %v199, 74
  %v203 = vpop.permute.xlu0 %202
  %204 = vrot.lane.b32.xlu0 %v200, 74
  %v205 = vpop.permute.xlu0 %204
  %206 = vrot.lane.b32.xlu0 %v201, 74
  %v207 = vpop.permute.xlu0 %206
  %vm208 = vcmask 605184
  %v209 = vsel %vm208, %v203, %v205
  %v210 = vsel %vm208, %v205, %v207
  %v213 = vsel %vm154, %v209, 0.0
  %v214 = vsel %vm155, %v210, 0.0
  %215 = vst [vmem:[#allocation1] ss:$2 sm:$0xff] %v32
  %s216 = scalar_lea.vmem [#allocation1], 16
  %217 = vst [vmem:[%s216] ss:$2 sm:$0xff] %v33
  %v218 = vld.sshfl [vmem:[#allocation1] sm:$0xff pattern:$0x75316420]
  %v219 = vld.sshfl [vmem:[#allocation1 + $0x8] sm:$0xff pattern:$0x75316420]
  %v220 = vld.sshfl [vmem:[#allocation1 + $0x10] sm:$0xff pattern:$0x75316420]
  %221 = vrot.lane.b32.xlu0 %v218, 70
  %v222 = vpop.permute.xlu0 %221
  %223 = vrot.lane.b32.xlu0 %v219, 70
  %v224 = vpop.permute.xlu0 %223
  %225 = vrot.lane.b32.xlu0 %v220, 70
  %v226 = vpop.permute.xlu0 %225
  %vm227 = vcmask 572416
  %v228 = vsel %vm227, %v222, %v224
  %v229 = vsel %vm227, %v224, %v226
  %v232 = vsel %vm175, %v228, 0.0
  %v233 = vsel %vm176, %v229, 0.0
  %234 = vst [vmem:[#allocation1] ss:$2 sm:$0xff] %v32
  %s235 = scalar_lea.vmem [#allocation1], 16
  %236 = vst [vmem:[%s235] ss:$2 sm:$0xff] %v33
  %v237 = vld.sshfl [vmem:[#allocation1] sm:$0xff pattern:$0x75316420]
  %v238 = vld.sshfl [vmem:[#allocation1 + $0x8] sm:$0xff pattern:$0x75316420]
  %v239 = vld.sshfl [vmem:[#allocation1 + $0x10] sm:$0xff pattern:$0x75316420]
  %240 = vrot.lane.b32.xlu0 %v237, 42
  %v241 = vpop.permute.xlu0 %240
  %242 = vrot.lane.b32.xlu0 %v238, 42
  %v243 = vpop.permute.xlu0 %242
  %244 = vrot.lane.b32.xlu0 %v239, 42
  %v245 = vpop.permute.xlu0 %244
  %vm246 = vcmask 343040
  %v247 = vsel %vm246, %v241, %v243
  %v248 = vsel %vm246, %v243, %v245
  %v251 = vsel %vm154, %v247, 0.0
  %v252 = vsel %vm155, %v248, 0.0
  %253 = vst [vmem:[#allocation1] ss:$2 sm:$0xff] %v32
  %s254 = scalar_lea.vmem [#allocation1], 16
  %255 = vst [vmem:[%s254] ss:$2 sm:$0xff] %v33
  %v256 = vld.sshfl [vmem:[#allocation1] sm:$0xff pattern:$0x75316420]
  %v257 = vld.sshfl [vmem:[#allocation1 + $0x8] sm:$0xff pattern:$0x75316420]
  %v258 = vld.sshfl [vmem:[#allocation1 + $0x10] sm:$0xff pattern:$0x75316420]
  %259 = vrot.lane.b32.xlu0 %v256, 38
  %v260 = vpop.permute.xlu0 %259
  %261 = vrot.lane.b32.xlu0 %v257, 38
  %v262 = vpop.permute.xlu0 %261
  %263 = vrot.lane.b32.xlu0 %v258, 38
  %v264 = vpop.permute.xlu0 %263
  %vm265 = vcmask 310272
  %v266 = vsel %vm265, %v260, %v262
  %v267 = vsel %vm265, %v262, %v264
  %v270 = vsel %vm175, %v266, 0.0
  %v271 = vsel %vm176, %v267, 0.0
  %vm272 = vcmp.ge.s32.totalorder %v30, 3
  %vm273 = vcmp.ge.s32.totalorder %v31, 3
  %274 = vst [vmem:[#allocation1] ss:$2 sm:$0xff] %v32
  %s275 = scalar_lea.vmem [#allocation1], 16
  %276 = vst [vmem:[%s275] ss:$2 sm:$0xff] %v33
  %v277 = vld.sshfl [vmem:[#allocation1] sm:$0xff pattern:$0x75316420]
  %v278 = vld.sshfl [vmem:[#allocation1 + $0x8] sm:$0xff pattern:$0x75316420]
  %v279 = vld.sshfl [vmem:[#allocation1 + $0x10] sm:$0xff pattern:$0x75316420]
  %280 = vrot.lane.b32.xlu0 %v277, 123
  %v281 = vpop.permute.xlu0 %280
  %282 = vrot.lane.b32.xlu0 %v278, 123
  %v283 = vpop.permute.xlu0 %282
  %284 = vrot.lane.b32.xlu0 %v279, 123
  %v285 = vpop.permute.xlu0 %284
  %vm286 = vcmask 1006592
  %v287 = vsel %vm286, %v281, %v283
  %v288 = vsel %vm286, %v283, %v285
  %v291 = vsel %vm272, %v287, 0.0
  %v292 = vsel %vm273, %v288, 0.0
  %vm293 = vcmp.lt.s32.totalorder %v30, 13
  %vm294 = vcmp.lt.s32.totalorder %v31, 13
  %295 = vst [vmem:[#allocation1] ss:$2 sm:$0xff] %v32
  %s296 = scalar_lea.vmem [#allocation1], 16
  %297 = vst [vmem:[%s296] ss:$2 sm:$0xff] %v33
  %v298 = vld.sshfl [vmem:[#allocation1] sm:$0xff pattern:$0x75316420]
  %v299 = vld.sshfl [vmem:[#allocation1 + $0x8] sm:$0xff pattern:$0x75316420]
  %v300 = vld.sshfl [vmem:[#allocation1 + $0x10] sm:$0xff pattern:$0x75316420]
  %301 = vrot.lane.b32.xlu0 %v298, 117
  %v302 = vpop.permute.xlu0 %301
  %303 = vrot.lane.b32.xlu0 %v299, 117
  %v304 = vpop.permute.xlu0 %303
  %305 = vrot.lane.b32.xlu0 %v300, 117
  %v306 = vpop.permute.xlu0 %305
  %vm307 = vcmask 957440
  %v308 = vsel %vm307, %v302, %v304
  %v309 = vsel %vm307, %v304, %v306
  %v312 = vsel %vm293, %v308, 0.0
  %v313 = vsel %vm294, %v309, 0.0
  %314 = vst [vmem:[#allocation1] ss:$2 sm:$0xff] %v32
  %s315 = scalar_lea.vmem [#allocation1], 16
  %316 = vst [vmem:[%s315] ss:$2 sm:$0xff] %v33
  %v317 = vld.sshfl [vmem:[#allocation1] sm:$0xff pattern:$0x75316420]
  %v318 = vld.sshfl [vmem:[#allocation1 + $0x8] sm:$0xff pattern:$0x75316420]
  %v319 = vld.sshfl [vmem:[#allocation1 + $0x10] sm:$0xff pattern:$0x75316420]
  %320 = vrot.lane.b32.xlu0 %v317, 75
  %v321 = vpop.permute.xlu0 %320
  %322 = vrot.lane.b32.xlu0 %v318, 75
  %v323 = vpop.permute.xlu0 %322
  %324 = vrot.lane.b32.xlu0 %v319, 75
  %v325 = vpop.permute.xlu0 %324
  %vm326 = vcmask 613376
  %v327 = vsel %vm326, %v321, %v323
  %v328 = vsel %vm326, %v323, %v325
  %v331 = vsel %vm272, %v327, 0.0
  %v332 = vsel %vm273, %v328, 0.0
  %333 = vst [vmem:[#allocation1] ss:$2 sm:$0xff] %v32
  %s334 = scalar_lea.vmem [#allocation1], 16
  %335 = vst [vmem:[%s334] ss:$2 sm:$0xff] %v33
  %v336 = vld.sshfl [vmem:[#allocation1] sm:$0xff pattern:$0x75316420]
  %v337 = vld.sshfl [vmem:[#allocation1 + $0x8] sm:$0xff pattern:$0x75316420]
  %v338 = vld.sshfl [vmem:[#allocation1 + $0x10] sm:$0xff pattern:$0x75316420]
  %339 = vrot.lane.b32.xlu0 %v336, 69
  %v340 = vpop.permute.xlu0 %339
  %341 = vrot.lane.b32.xlu0 %v337, 69
  %v342 = vpop.permute.xlu0 %341
  %343 = vrot.lane.b32.xlu0 %v338, 69
  %v344 = vpop.permute.xlu0 %343
  %vm345 = vcmask 564224
  %v346 = vsel %vm345, %v340, %v342
  %v347 = vsel %vm345, %v342, %v344
  %v350 = vsel %vm293, %v346, 0.0
  %v351 = vsel %vm294, %v347, 0.0
  %352 = vst [vmem:[#allocation1] ss:$2 sm:$0xff] %v32
  %s353 = scalar_lea.vmem [#allocation1], 16
  %354 = vst [vmem:[%s353] ss:$2 sm:$0xff] %v33
  %v355 = vld.sshfl [vmem:[#allocation1] sm:$0xff pattern:$0x75316420]
  %v356 = vld.sshfl [vmem:[#allocation1 + $0x8] sm:$0xff pattern:$0x75316420]
  %v357 = vld.sshfl [vmem:[#allocation1 + $0x10] sm:$0xff pattern:$0x75316420]
  %358 = vrot.lane.b32.xlu0 %v355, 27
  %v359 = vpop.permute.xlu0 %358
  %360 = vrot.lane.b32.xlu0 %v356, 27
  %v361 = vpop.permute.xlu0 %360
  %362 = vrot.lane.b32.xlu0 %v357, 27
  %v363 = vpop.permute.xlu0 %362
  %vm364 = vcmask 220160
  %v365 = vsel %vm364, %v359, %v361
  %v366 = vsel %vm364, %v361, %v363
  %v369 = vsel %vm272, %v365, 0.0
  %v370 = vsel %vm273, %v366, 0.0
  %371 = vst [vmem:[#allocation1] ss:$2 sm:$0xff] %v32
  %s372 = scalar_lea.vmem [#allocation1], 16
  %373 = vst [vmem:[%s372] ss:$2 sm:$0xff] %v33
  %v374 = vld.sshfl [vmem:[#allocation1] sm:$0xff pattern:$0x75316420]
  %v375 = vld.sshfl [vmem:[#allocation1 + $0x8] sm:$0xff pattern:$0x75316420]
  %v376 = vld.sshfl [vmem:[#allocation1 + $0x10] sm:$0xff pattern:$0x75316420]
  %377 = vrot.lane.b32.xlu0 %v374, 21
  %v378 = vpop.permute.xlu0 %377
  %379 = vrot.lane.b32.xlu0 %v375, 21
  %v380 = vpop.permute.xlu0 %379
  %381 = vrot.lane.b32.xlu0 %v376, 21
  %v382 = vpop.permute.xlu0 %381
  %vm383 = vcmask 171008
  %v384 = vsel %vm383, %v378, %v380
  %v385 = vsel %vm383, %v380, %v382
  %v388 = vsel %vm293, %v384, 0.0
  %v389 = vsel %vm294, %v385, 0.0
  %390 = vst [vmem:[#allocation1] ss:$2 sm:$0xff] %v32
  %s391 = scalar_lea.vmem [#allocation1], 16
  %392 = vst [vmem:[%s391] ss:$2 sm:$0xff] %v33
  %v393 = vld.sshfl [vmem:[#allocation1] sm:$0xff pattern:$0x75316420]
  %v394 = vld.sshfl [vmem:[#allocation1 + $0x8] sm:$0xff pattern:$0x75316420]
  %v395 = vld.sshfl [vmem:[#allocation1 + $0x10] sm:$0xff pattern:$0x75316420]
  %v401 = vrot.slane %v55, 4
  %v402 = vrot.slane %v56, 4
  %403 = vrot.lane.b32.xlu0 %v401, 56
  %v404 = vpop.permute.xlu0 %403
  %405 = vrot.lane.b32.xlu0 %v402, 56
  %v406 = vpop.permute.xlu0 %405
  %vm407 = vcmask 457728
  %v408 = vsel %vm407, %v404, %v406
  %412 = vst [vmem:[#allocation1] ss:$2 sm:$0xff] %v32
  %s413 = scalar_lea.vmem [#allocation1], 16
  %414 = vst [vmem:[%s413] ss:$2 sm:$0xff] %v33
  %v415 = vld.sshfl [vmem:[#allocation1] sm:$0xff pattern:$0x75316420]
  %v416 = vld.sshfl [vmem:[#allocation1 + $0x8] sm:$0xff pattern:$0x75316420]
  %v417 = vld.sshfl [vmem:[#allocation1 + $0x10] sm:$0xff pattern:$0x75316420]
  %418 = vrot.lane.b32.xlu0 %v415, 16
  %v419 = vpop.permute.xlu0 %418
  %420 = vrot.lane.b32.xlu0 %v416, 16
  %v421 = vpop.permute.xlu0 %420
  %422 = vrot.lane.b32.xlu0 %v417, 16
  %v423 = vpop.permute.xlu0 %422
  %vm424 = vcmask 130048
  %v425 = vsel %vm424, %v419, %v421
  %v426 = vsel %vm424, %v421, %v423
  %v432 = vrot.slane %v76, 4
  %v433 = vrot.slane %v77, 4
  %434 = vrot.lane.b32.xlu0 %v432, 56
  %v435 = vpop.permute.xlu0 %434
  %436 = vrot.lane.b32.xlu0 %v433, 56
  %v437 = vpop.permute.xlu0 %436
  %v438 = vsel %vm407, %v435, %v437
  %444 = vrot.lane.b32.xlu0 %v95, 56
  %v445 = vpop.permute.xlu0 %444
  %446 = vrot.lane.b32.xlu0 %v96, 56
  %v447 = vpop.permute.xlu0 %446
  %v448 = vsel %vm407, %v445, %v447
  %v454 = vrot.slane %v114, 4
  %v455 = vrot.slane %v115, 4
  %456 = vrot.lane.b32.xlu0 %v454, 56
  %v457 = vpop.permute.xlu0 %456
  %458 = vrot.lane.b32.xlu0 %v455, 56
  %v459 = vpop.permute.xlu0 %458
  %v460 = vsel %vm407, %v457, %v459
  %466 = vrot.lane.b32.xlu0 %v133, 56
  %v467 = vpop.permute.xlu0 %466
  %468 = vrot.lane.b32.xlu0 %v134, 56
  %v469 = vpop.permute.xlu0 %468
  %v470 = vsel %vm407, %v467, %v469
  %s474 = scalar_lea.vmem [#allocation1], 1
  %475 = vst [vmem:[%s474] ss:$2 sm:$0xff] %v32
  %s476 = scalar_lea.vmem [#allocation1], 17
  %477 = vst [vmem:[%s476] ss:$2 sm:$0xff] %v33
  %v478 = vld.sshfl [vmem:[#allocation1] sm:$0xff pattern:$0x75316420]
  %v479 = vld.sshfl [vmem:[#allocation1 + $0x8] sm:$0xff pattern:$0x75316420]
  %v480 = vld.sshfl [vmem:[#allocation1 + $0x10] sm:$0xff pattern:$0x75316420]
  %481 = vrot.lane.b32.xlu0 %v478, 112
  %v482 = vpop.permute.xlu0 %481
  %483 = vrot.lane.b32.xlu0 %v479, 112
  %v484 = vpop.permute.xlu0 %483
  %485 = vrot.lane.b32.xlu0 %v480, 112
  %v486 = vpop.permute.xlu0 %485
  %vm487 = vcmask 916480
  %v488 = vsel %vm487, %v482, %v484
  %v489 = vsel %vm487, %v484, %v486
  %495 = vrot.lane.b32.xlu0 %v152, 56
  %v496 = vpop.permute.xlu0 %495
  %497 = vrot.lane.b32.xlu0 %v153, 56
  %v498 = vpop.permute.xlu0 %497
  %v499 = vsel %vm407, %v496, %v498
  %v505 = vrot.slane %v173, 4
  %v506 = vrot.slane %v174, 4
  %507 = vrot.lane.b32.xlu0 %v505, 56
  %v508 = vpop.permute.xlu0 %507
  %509 = vrot.lane.b32.xlu0 %v506, 56
  %v510 = vpop.permute.xlu0 %509
  %v511 = vsel %vm407, %v508, %v510
  %515 = vst [vmem:[#allocation1] ss:$2 sm:$0xff] %v32
  %s516 = scalar_lea.vmem [#allocation1], 16
  %517 = vst [vmem:[%s516] ss:$2 sm:$0xff] %v33
  %v518 = vld.sshfl [vmem:[#allocation1] sm:$0xff pattern:$0x75316420]
  %v519 = vld.sshfl [vmem:[#allocation1 + $0x8] sm:$0xff pattern:$0x75316420]
  %v520 = vld.sshfl [vmem:[#allocation1 + $0x10] sm:$0xff pattern:$0x75316420]
  %521 = vrot.lane.b32.xlu0 %v518, 32
  %v522 = vpop.permute.xlu0 %521
  %523 = vrot.lane.b32.xlu0 %v519, 32
  %v524 = vpop.permute.xlu0 %523
  %525 = vrot.lane.b32.xlu0 %v520, 32
  %v526 = vpop.permute.xlu0 %525
  %vm527 = vcmask 261120
  %v528 = vsel %vm527, %v522, %v524
  %v529 = vsel %vm527, %v524, %v526
  %v535 = vrot.slane %v194, 4
  %v536 = vrot.slane %v195, 4
  %537 = vrot.lane.b32.xlu0 %v535, 56
  %v538 = vpop.permute.xlu0 %537
  %539 = vrot.lane.b32.xlu0 %v536, 56
  %v540 = vpop.permute.xlu0 %539
  %v541 = vsel %vm407, %v538, %v540
  %547 = vrot.lane.b32.xlu0 %v213, 56
  %v548 = vpop.permute.xlu0 %547
  %549 = vrot.lane.b32.xlu0 %v214, 56
  %v550 = vpop.permute.xlu0 %549
  %v551 = vsel %vm407, %v548, %v550
  %v557 = vrot.slane %v232, 4
  %v558 = vrot.slane %v233, 4
  %559 = vrot.lane.b32.xlu0 %v557, 56
  %v560 = vpop.permute.xlu0 %559
  %561 = vrot.lane.b32.xlu0 %v558, 56
  %v562 = vpop.permute.xlu0 %561
  %v563 = vsel %vm407, %v560, %v562
  %569 = vrot.lane.b32.xlu0 %v251, 56
  %v570 = vpop.permute.xlu0 %569
  %571 = vrot.lane.b32.xlu0 %v252, 56
  %v572 = vpop.permute.xlu0 %571
  %v573 = vsel %vm407, %v570, %v572
  %s577 = scalar_lea.vmem [#allocation1], 1
  %578 = vst [vmem:[%s577] ss:$2 sm:$0xff] %v32
  %s579 = scalar_lea.vmem [#allocation1], 17
  %580 = vst [vmem:[%s579] ss:$2 sm:$0xff] %v33
  %v581 = vld.sshfl [vmem:[#allocation1] sm:$0xff pattern:$0x75316420]
  %v582 = vld.sshfl [vmem:[#allocation1 + $0x8] sm:$0xff pattern:$0x75316420]
  %v583 = vld.sshfl [vmem:[#allocation1 + $0x10] sm:$0xff pattern:$0x75316420]
  %584 = vrot.lane.b32.xlu0 %v581, 96
  %v585 = vpop.permute.xlu0 %584
  %586 = vrot.lane.b32.xlu0 %v582, 96
  %v587 = vpop.permute.xlu0 %586
  %588 = vrot.lane.b32.xlu0 %v583, 96
  %v589 = vpop.permute.xlu0 %588
  %vm590 = vcmask 785408
  %v591 = vsel %vm590, %v585, %v587
  %v592 = vsel %vm590, %v587, %v589
  %vm596 = vcmask 1043456
  %v597 = vsel %vm596, %v393, %v404
  %v598 = vsel %vm596, %v394, %v408
  %v599 = vsel %vm596, %v395, %v406
  %v600 = vsel %vm596, %v419, %v435
  %v601 = vsel %vm596, %v425, %v438
  %v602 = vsel %vm596, %v426, %v437
  %v603 = vsel %vm596, %v445, %v457
  %v604 = vsel %vm596, %v448, %v460
  %v605 = vsel %vm596, %v447, %v459
  %v606 = vsel %vm596, %v467, %v488
  %v607 = vsel %vm596, %v470, %v489
  %v608 = vsel %vm596, %v469, %v486
  %v609 = vsel %vm596, %v496, %v508
  %v610 = vsel %vm596, %v499, %v511
  %v611 = vsel %vm596, %v498, %v510
  %v612 = vsel %vm596, %v522, %v538
  %v613 = vsel %vm596, %v528, %v541
  %v614 = vsel %vm596, %v529, %v540
  %v615 = vsel %vm596, %v548, %v560
  %v616 = vsel %vm596, %v551, %v563
  %v617 = vsel %vm596, %v550, %v562
  %v618 = vsel %vm596, %v570, %v591
  %v619 = vsel %vm596, %v573, %v592
  %v620 = vsel %vm596, %v572, %v589
  %v623 = vrot.slane %v291, 4
  %v624 = vrot.slane %v292, 4
  %627 = vst [vmem:[#allocation1] ss:$2 sm:$0xff] %v32
  %s628 = scalar_lea.vmem [#allocation1], 16
  %629 = vst [vmem:[%s628] ss:$2 sm:$0xff] %v33
  %v630 = vld.sshfl [vmem:[#allocation1] sm:$0xff pattern:$0x75316420]
  %v631 = vld.sshfl [vmem:[#allocation1 + $0x8] sm:$0xff pattern:$0x75316420]
  %v632 = vld.sshfl [vmem:[#allocation1 + $0x10] sm:$0xff pattern:$0x75316420]
  %633 = vrot.lane.b32.xlu0 %v630, 120
  %v634 = vpop.permute.xlu0 %633
  %635 = vrot.lane.b32.xlu0 %v631, 120
  %v636 = vpop.permute.xlu0 %635
  %637 = vrot.lane.b32.xlu0 %v632, 120
  %v638 = vpop.permute.xlu0 %637
  %vm639 = vcmask 982016
  %v640 = vsel %vm639, %v634, %v636
  %v641 = vsel %vm639, %v636, %v638
  %v646 = vrot.slane %v312, 4
  %v647 = vrot.slane %v313, 4
  %v652 = vrot.slane %v350, 4
  %v653 = vrot.slane %v351, 4
  %s656 = scalar_lea.vmem [#allocation1], 1
  %657 = vst [vmem:[%s656] ss:$2 sm:$0xff] %v32
  %s658 = scalar_lea.vmem [#allocation1], 17
  %659 = vst [vmem:[%s658] ss:$2 sm:$0xff] %v33
  %v660 = vld.sshfl [vmem:[#allocation1] sm:$0xff pattern:$0x75316420]
  %v661 = vld.sshfl [vmem:[#allocation1 + $0x8] sm:$0xff pattern:$0x75316420]
  %v662 = vld.sshfl [vmem:[#allocation1 + $0x10] sm:$0xff pattern:$0x75316420]
  %663 = vrot.lane.b32.xlu0 %v660, 24
  %v664 = vpop.permute.xlu0 %663
  %665 = vrot.lane.b32.xlu0 %v661, 24
  %v666 = vpop.permute.xlu0 %665
  %667 = vrot.lane.b32.xlu0 %v662, 24
  %v668 = vpop.permute.xlu0 %667
  %vm669 = vcmask 195584
  %v670 = vsel %vm669, %v664, %v666
  %v671 = vsel %vm669, %v666, %v668
  %v674 = vsel %vm596, %v270, %v623
  %v675 = vsel %vm596, %v271, %v624
  %v676 = vsel %vm596, %v640, %v646
  %v677 = vsel %vm596, %v641, %v647
  %v678 = vsel %vm596, %v331, %v652
  %v679 = vsel %vm596, %v332, %v653
  %v680 = vsel %vm596, %v369, %v670
  %v681 = vsel %vm596, %v370, %v671
  %692 = vrot.lane.b32.xlu0 %v674, 56
  %v693 = vpop.permute.xlu0 %692
  %694 = vrot.lane.b32.xlu0 %v675, 56
  %v695 = vpop.permute.xlu0 %694
  %696 = vrot.lane.b32.xlu0 %v676, 56
  %v697 = vpop.permute.xlu0 %696
  %698 = vrot.lane.b32.xlu0 %v677, 56
  %v699 = vpop.permute.xlu0 %698
  %700 = vrot.lane.b32.xlu0 %v678, 56
  %v701 = vpop.permute.xlu0 %700
  %702 = vrot.lane.b32.xlu0 %v679, 56
  %v703 = vpop.permute.xlu0 %702
  %704 = vrot.lane.b32.xlu0 %v680, 56
  %v705 = vpop.permute.xlu0 %704
  %706 = vrot.lane.b32.xlu0 %v681, 56
  %v707 = vpop.permute.xlu0 %706
  %708 = vrot.lane.b32.xlu0 %v388, 56
  %v709 = vpop.permute.xlu0 %708
  %710 = vrot.lane.b32.xlu0 %v389, 56
  %v711 = vpop.permute.xlu0 %710
  %v712 = vsel %vm407, %v693, %v695
  %v713 = vsel %vm407, %v697, %v699
  %v714 = vsel %vm407, %v701, %v703
  %v715 = vsel %vm407, %v705, %v707
  %v716 = vsel %vm407, %v709, %v711
  %741 = vrot.lane.b32.xlu0 %v597, 72
  %v742 = vpop.permute.xlu0 %741
  %743 = vrot.lane.b32.xlu0 %v598, 72
  %v744 = vpop.permute.xlu0 %743
  %745 = vrot.lane.b32.xlu0 %v599, 72
  %v746 = vpop.permute.xlu0 %745
  %747 = vrot.lane.b32.xlu0 %v600, 72
  %v748 = vpop.permute.xlu0 %747
  %749 = vrot.lane.b32.xlu0 %v601, 72
  %v750 = vpop.permute.xlu0 %749
  %751 = vrot.lane.b32.xlu0 %v602, 72
  %v752 = vpop.permute.xlu0 %751
  %753 = vrot.lane.b32.xlu0 %v603, 72
  %v754 = vpop.permute.xlu0 %753
  %755 = vrot.lane.b32.xlu0 %v604, 72
  %v756 = vpop.permute.xlu0 %755
  %757 = vrot.lane.b32.xlu0 %v605, 72
  %v758 = vpop.permute.xlu0 %757
  %759 = vrot.lane.b32.xlu0 %v606, 72
  %v760 = vpop.permute.xlu0 %759
  %761 = vrot.lane.b32.xlu0 %v607, 72
  %v762 = vpop.permute.xlu0 %761
  %763 = vrot.lane.b32.xlu0 %v608, 72
  %v764 = vpop.permute.xlu0 %763
  %765 = vrot.lane.b32.xlu0 %v609, 72
  %v766 = vpop.permute.xlu0 %765
  %767 = vrot.lane.b32.xlu0 %v610, 72
  %v768 = vpop.permute.xlu0 %767
  %769 = vrot.lane.b32.xlu0 %v611, 72
  %v770 = vpop.permute.xlu0 %769
  %771 = vrot.lane.b32.xlu0 %v612, 72
  %v772 = vpop.permute.xlu0 %771
  %773 = vrot.lane.b32.xlu0 %v613, 72
  %v774 = vpop.permute.xlu0 %773
  %775 = vrot.lane.b32.xlu0 %v614, 72
  %v776 = vpop.permute.xlu0 %775
  %777 = vrot.lane.b32.xlu0 %v615, 72
  %v778 = vpop.permute.xlu0 %777
  %779 = vrot.lane.b32.xlu0 %v616, 72
  %v780 = vpop.permute.xlu0 %779
  %781 = vrot.lane.b32.xlu0 %v617, 72
  %v782 = vpop.permute.xlu0 %781
  %783 = vrot.lane.b32.xlu0 %v618, 72
  %v784 = vpop.permute.xlu0 %783
  %785 = vrot.lane.b32.xlu0 %v619, 72
  %v786 = vpop.permute.xlu0 %785
  %787 = vrot.lane.b32.xlu0 %v620, 72
  %v788 = vpop.permute.xlu0 %787
  %789 = vrot.lane.b32.xlu0 %v693, 72
  %v790 = vpop.permute.xlu0 %789
  %791 = vrot.lane.b32.xlu0 %v712, 72
  %v792 = vpop.permute.xlu0 %791
  %793 = vrot.lane.b32.xlu0 %v695, 72
  %v794 = vpop.permute.xlu0 %793
  %795 = vrot.lane.b32.xlu0 %v697, 72
  %v796 = vpop.permute.xlu0 %795
  %797 = vrot.lane.b32.xlu0 %v713, 72
  %v798 = vpop.permute.xlu0 %797
  %799 = vrot.lane.b32.xlu0 %v699, 72
  %v800 = vpop.permute.xlu0 %799
  %801 = vrot.lane.b32.xlu0 %v701, 72
  %v802 = vpop.permute.xlu0 %801
  %803 = vrot.lane.b32.xlu0 %v714, 72
  %v804 = vpop.permute.xlu0 %803
  %805 = vrot.lane.b32.xlu0 %v703, 72
  %v806 = vpop.permute.xlu0 %805
  %807 = vrot.lane.b32.xlu0 %v705, 72
  %v808 = vpop.permute.xlu0 %807
  %809 = vrot.lane.b32.xlu0 %v715, 72
  %v810 = vpop.permute.xlu0 %809
  %811 = vrot.lane.b32.xlu0 %v707, 72
  %v812 = vpop.permute.xlu0 %811
  %813 = vrot.lane.b32.xlu0 %v709, 72
  %v814 = vpop.permute.xlu0 %813
  %815 = vrot.lane.b32.xlu0 %v716, 72
  %v816 = vpop.permute.xlu0 %815
  %817 = vrot.lane.b32.xlu0 %v711, 72
  %v818 = vpop.permute.xlu0 %817
  %vm819 = vcmask 588800
  %v820 = vsel %vm819, %v742, %v744
  %v821 = vsel %vm819, %v744, %v746
  %v822 = vsel %vm819, %v748, %v750
  %v823 = vsel %vm819, %v750, %v752
  %v824 = vsel %vm819, %v754, %v756
  %v825 = vsel %vm819, %v756, %v758
  %v826 = vsel %vm819, %v760, %v762
  %v827 = vsel %vm819, %v762, %v764
  %v828 = vsel %vm819, %v766, %v768
  %v829 = vsel %vm819, %v768, %v770
  %v830 = vsel %vm819, %v772, %v774
  %v831 = vsel %vm819, %v774, %v776
  %v832 = vsel %vm819, %v778, %v780
  %v833 = vsel %vm819, %v780, %v782
  %v834 = vsel %vm819, %v784, %v786
  %v835 = vsel %vm819, %v786, %v788
  %v836 = vsel %vm819, %v790, %v792
  %v837 = vsel %vm819, %v792, %v794
  %v838 = vsel %vm819, %v796, %v798
  %v839 = vsel %vm819, %v798, %v800
  %v840 = vsel %vm819, %v802, %v804
  %v841 = vsel %vm819, %v804, %v806
  %v842 = vsel %vm819, %v808, %v810
  %v843 = vsel %vm819, %v810, %v812
  %v844 = vsel %vm819, %v814, %v816
  %v845 = vsel %vm819, %v816, %v818
  %vm870 = vcmask 818176
  %v872 = vsel %vm870, %v17, 0
  %v875 = vsel %vm870, %v18, 0
  %v878 = vsel %vm870, %v19, 0
  %v881 = vsel %vm870, %v20, 0
  %v883 = vsel %vm596, %v844, 0
  %v885 = vsel %vm596, %v845, 0
  %887 = vmatpush.msra.mxu0 0.0
  %888 = vmatpush.msra.mxu0 0.0
  %889 = vmatpush.msra.mxu0 0.0
  %890 = vmatpush.msra.mxu0 %v883
  %891 = vmatpush.msra.mxu0 %v842
  %892 = vmatpush.msra.mxu0 %v840
  %893 = vmatpush.msra.mxu0 %v838
  %894 = vmatpush.msra.mxu0 %v836
  %895 = vmatpush.msra.mxu0 %v834
  %896 = vmatpush.msra.mxu0 %v832
  %897 = vmatpush.msra.mxu0 %v830
  %898 = vmatpush.msra.mxu0 %v828
  %899 = vmatpush.msra.mxu0 %v826
  %900 = vmatpush.msra.mxu0 %v824
  %901 = vmatpush.msra.mxu0 %v822
  %902 = vmatpush.msra.mxu0 %v820
  %903 = vmatmul.f32.gmra.mxu0 %v872
  %v904 = vpop.f32.mrf.mxu0
  %v905 = vadd.f32 0.0, %v904
  %906 = vmatmul.f32.gmra.mxu0 %v875
  %v907 = vpop.f32.mrf.mxu0
  %v908 = vadd.f32 0.0, %v907
  %909 = vmatmul.f32.gmra.mxu0 %v878
  %v910 = vpop.f32.mrf.mxu0
  %v911 = vadd.f32 0.0, %v910
  %912 = vmatmul.f32.gmra.mxu0 %v881
  %v913 = vpop.f32.mrf.mxu0
  %v914 = vadd.f32 0.0, %v913
  %915 = vdwg.mxu0
  %916 = vmatpush.msra.mxu0 0.0
  %917 = vmatpush.msra.mxu0 0.0
  %918 = vmatpush.msra.mxu0 0.0
  %919 = vmatpush.msra.mxu0 %v885
  %920 = vmatpush.msra.mxu0 %v843
  %921 = vmatpush.msra.mxu0 %v841
  %922 = vmatpush.msra.mxu0 %v839
  %923 = vmatpush.msra.mxu0 %v837
  %924 = vmatpush.msra.mxu0 %v835
  %925 = vmatpush.msra.mxu0 %v833
  %926 = vmatpush.msra.mxu0 %v831
  %927 = vmatpush.msra.mxu0 %v829
  %928 = vmatpush.msra.mxu0 %v827
  %929 = vmatpush.msra.mxu0 %v825
  %930 = vmatpush.msra.mxu0 %v823
  %931 = vmatpush.msra.mxu0 %v821
  %932 = vmatmul.f32.gmra.mxu0 %v872
  %v933 = vpop.f32.mrf.mxu0
  %v934 = vadd.f32 0.0, %v933
  %935 = vmatmul.f32.gmra.mxu0 %v875
  %v936 = vpop.f32.mrf.mxu0
  %v937 = vadd.f32 0.0, %v936
  %938 = vmatmul.f32.gmra.mxu0 %v878
  %v939 = vpop.f32.mrf.mxu0
  %v940 = vadd.f32 0.0, %v939
  %941 = vmatmul.f32.gmra.mxu0 %v881
  %v942 = vpop.f32.mrf.mxu0
  %v943 = vadd.f32 0.0, %v942
  %944 = vdwg.mxu0
  %946 = vset.pattern.permute.xlu0 0
  %947 = vperm.xlu0 %946, %v22
  %v948 = vpop.permute.xlu0 %947
  %951 = vset.pattern.permute.xlu0 0
  %952 = vperm.xlu0 %951, %v23
  %v953 = vpop.permute.xlu0 %952
  %956 = vset.pattern.permute.xlu0 0
  %957 = vperm.xlu0 %956, %v24
  %v958 = vpop.permute.xlu0 %957
  %961 = vset.pattern.permute.xlu0 0
  %962 = vperm.xlu0 %961, %v25
  %v963 = vpop.permute.xlu0 %962
  %v965 = vmul.f32 %v905, %v948
  %v966 = vmul.f32 %v934, %v948
  %v967 = vmul.f32 %v908, %v953
  %v968 = vmul.f32 %v937, %v953
  %v969 = vmul.f32 %v911, %v958
  %v970 = vmul.f32 %v940, %v958
  %v971 = vmul.f32 %v914, %v963
  %v972 = vmul.f32 %v943, %v963
  %973 = vset.pattern.permute.xlu0 1
  %974 = vperm.xlu0 %973, %v22
  %v975 = vpop.permute.xlu0 %974
  %977 = vset.pattern.permute.xlu0 1
  %978 = vperm.xlu0 %977, %v23
  %v979 = vpop.permute.xlu0 %978
  %981 = vset.pattern.permute.xlu0 1
  %982 = vperm.xlu0 %981, %v24
  %v983 = vpop.permute.xlu0 %982
  %985 = vset.pattern.permute.xlu0 1
  %986 = vperm.xlu0 %985, %v25
  %v987 = vpop.permute.xlu0 %986
  %v989 = vadd.f32 %v965, %v975
  %v990 = vadd.f32 %v966, %v975
  %v991 = vadd.f32 %v967, %v979
  %v992 = vadd.f32 %v968, %v979
  %v993 = vadd.f32 %v969, %v983
  %v994 = vadd.f32 %v970, %v983
  %v995 = vadd.f32 %v971, %v987
  %v996 = vadd.f32 %v972, %v987
  %v997 = vmax.f32 %v989, 0.0
  %v998 = vmax.f32 %v990, 0.0
  %v999 = vmax.f32 %v991, 0.0
  %v1000 = vmax.f32 %v992, 0.0
  %v1001 = vmax.f32 %v993, 0.0
  %v1002 = vmax.f32 %v994, 0.0
  %v1003 = vmax.f32 %v995, 0.0
  %v1004 = vmax.f32 %v996, 0.0
  %v1006 = vsel %vm527, %v21, 0
  %1008 = vmatpush.msra.mxu0 0.0
  %1009 = vmatpush.msra.mxu0 0.0
  %1010 = vmatpush.msra.mxu0 0.0
  %1011 = vmatpush.msra.mxu0 0.0
  %1012 = vmatpush.msra.mxu0 0.0
  %1013 = vmatpush.msra.mxu0 0.0
  %1014 = vmatpush.msra.mxu0 0.0
  %1015 = vmatpush.msra.mxu0 0.0
  %1016 = vmatpush.msra.mxu0 0.0
  %1017 = vmatpush.msra.mxu0 0.0
  %1018 = vmatpush.msra.mxu0 0.0
  %1019 = vmatpush.msra.mxu0 0.0
  %1020 = vmatpush.msra.mxu0 %v1003
  %1021 = vmatpush.msra.mxu0 %v1001
  %1022 = vmatpush.msra.mxu0 %v999
  %1023 = vmatpush.msra.mxu0 %v997
  %1024 = vmatmul.f32.gmra.mxu0 %v1006
  %v1025 = vpop.f32.mrf.mxu0
  %v1026 = vadd.f32 0.0, %v1025
  %1027 = vdwg.mxu0
  %1028 = vmatpush.msra.mxu0 0.0
  %1029 = vmatpush.msra.mxu0 0.0
  %1030 = vmatpush.msra.mxu0 0.0
  %1031 = vmatpush.msra.mxu0 0.0
  %1032 = vmatpush.msra.mxu0 0.0
  %1033 = vmatpush.msra.mxu0 0.0
  %1034 = vmatpush.msra.mxu0 0.0
  %1035 = vmatpush.msra.mxu0 0.0
  %1036 = vmatpush.msra.mxu0 0.0
  %1037 = vmatpush.msra.mxu0 0.0
  %1038 = vmatpush.msra.mxu0 0.0
  %1039 = vmatpush.msra.mxu0 0.0
  %1040 = vmatpush.msra.mxu0 %v1004
  %1041 = vmatpush.msra.mxu0 %v1002
  %1042 = vmatpush.msra.mxu0 %v1000
  %1043 = vmatpush.msra.mxu0 %v998
  %1044 = vmatmul.f32.gmra.mxu0 %v1006
  %v1045 = vpop.f32.mrf.mxu0
  %v1046 = vadd.f32 0.0, %v1045
  %1047 = vdwg.mxu0
  %1049 = vset.pattern.permute.xlu0 0
  %1050 = vperm.xlu0 %1049, %v26
  %v1051 = vpop.permute.xlu0 %1050
  %v1053 = vmul.f32 %v1026, %v1051
  %v1054 = vmul.f32 %v1046, %v1051
  %1055 = vset.pattern.permute.xlu0 1
  %1056 = vperm.xlu0 %1055, %v26
  %v1057 = vpop.permute.xlu0 %1056
  %v1059 = vadd.f32 %v1053, %v1057
  %v1060 = vadd.f32 %v1054, %v1057
  %v1061 = vmax.f32 %v1059, 0.0
  %v1062 = vmax.f32 %v1060, 0.0
  %1063 = vst [vmem:[%s4] sm:$0xff] %v1061
  %1064 = vst [vmem:[%s4 + $0x8] sm:$0xff] %v1062
  %s1065 = scalar_lea.vmem %s0, 12
  %v1066 = vld [vmem:[%s1065] sm:$0xff]
  %v1067 = vld [vmem:[%s1065 + $0x8] sm:$0xf]
  %1070 = vst [vmem:[#allocation1] ss:$2 sm:$0xff] %v1066
  %s1071 = scalar_lea.vmem [#allocation1], 16
  %1072 = vst [vmem:[%s1071] ss:$2 sm:$0xff] %v1067
  %v1073 = vld.sshfl [vmem:[#allocation1] sm:$0xff pattern:$0x75316420]
  %v1074 = vld.sshfl [vmem:[#allocation1 + $0x8] sm:$0xff pattern:$0x75316420]
  %v1075 = vld.sshfl [vmem:[#allocation1 + $0x10] sm:$0xff pattern:$0x75316420]
  %1076 = vrot.lane.b32.xlu0 %v1073, 89
  %v1077 = vpop.permute.xlu0 %1076
  %1078 = vrot.lane.b32.xlu0 %v1074, 89
  %v1079 = vpop.permute.xlu0 %1078
  %1080 = vrot.lane.b32.xlu0 %v1075, 89
  %v1081 = vpop.permute.xlu0 %1080
  %v1082 = vsel %vm50, %v1077, %v1079
  %v1083 = vsel %vm50, %v1079, %v1081
  %v1086 = vsel %vm34, %v1082, 0.0
  %v1087 = vsel %vm35, %v1083, 0.0
  %1088 = vst [vmem:[#allocation1] ss:$2 sm:$0xff] %v1066
  %s1089 = scalar_lea.vmem [#allocation1], 16
  %1090 = vst [vmem:[%s1089] ss:$2 sm:$0xff] %v1067
  %v1091 = vld.sshfl [vmem:[#allocation1] sm:$0xff pattern:$0x75316420]
  %v1092 = vld.sshfl [vmem:[#allocation1 + $0x8] sm:$0xff pattern:$0x75316420]
  %v1093 = vld.sshfl [vmem:[#allocation1 + $0x10] sm:$0xff pattern:$0x75316420]
  %1094 = vrot.lane.b32.xlu0 %v1091, 87
  %v1095 = vpop.permute.xlu0 %1094
  %1096 = vrot.lane.b32.xlu0 %v1092, 87
  %v1097 = vpop.permute.xlu0 %1096
  %1098 = vrot.lane.b32.xlu0 %v1093, 87
  %v1099 = vpop.permute.xlu0 %1098
  %v1100 = vsel %vm71, %v1095, %v1097
  %v1101 = vsel %vm71, %v1097, %v1099
  %v1104 = vsel %vm57, %v1100, 0.0
  %v1105 = vsel %vm58, %v1101, 0.0
  %1106 = vst [vmem:[#allocation1] ss:$2 sm:$0xff] %v1066
  %s1107 = scalar_lea.vmem [#allocation1], 16
  %1108 = vst [vmem:[%s1107] ss:$2 sm:$0xff] %v1067
  %v1109 = vld.sshfl [vmem:[#allocation1] sm:$0xff pattern:$0x75316420]
  %v1110 = vld.sshfl [vmem:[#allocation1 + $0x8] sm:$0xff pattern:$0x75316420]
  %v1111 = vld.sshfl [vmem:[#allocation1 + $0x10] sm:$0xff pattern:$0x75316420]
  %1112 = vrot.lane.b32.xlu0 %v1109, 73
  %v1113 = vpop.permute.xlu0 %1112
  %1114 = vrot.lane.b32.xlu0 %v1110, 73
  %v1115 = vpop.permute.xlu0 %1114
  %1116 = vrot.lane.b32.xlu0 %v1111, 73
  %v1117 = vpop.permute.xlu0 %1116
  %v1118 = vsel %vm90, %v1113, %v1115
  %v1119 = vsel %vm90, %v1115, %v1117
  %v1122 = vsel %vm34, %v1118, 0.0
  %v1123 = vsel %vm35, %v1119, 0.0
  %1124 = vst [vmem:[#allocation1] ss:$2 sm:$0xff] %v1066
  %s1125 = scalar_lea.vmem [#allocation1], 16
  %1126 = vst [vmem:[%s1125] ss:$2 sm:$0xff] %v1067
  %v1127 = vld.sshfl [vmem:[#allocation1] sm:$0xff pattern:$0x75316420]
  %v1128 = vld.sshfl [vmem:[#allocation1 + $0x8] sm:$0xff pattern:$0x75316420]
  %v1129 = vld.sshfl [vmem:[#allocation1 + $0x10] sm:$0xff pattern:$0x75316420]
  %1130 = vrot.lane.b32.xlu0 %v1127, 71
  %v1131 = vpop.permute.xlu0 %1130
  %1132 = vrot.lane.b32.xlu0 %v1128, 71
  %v1133 = vpop.permute.xlu0 %1132
  %1134 = vrot.lane.b32.xlu0 %v1129, 71
  %v1135 = vpop.permute.xlu0 %1134
  %v1136 = vsel %vm109, %v1131, %v1133
  %v1137 = vsel %vm109, %v1133, %v1135
  %v1140 = vsel %vm57, %v1136, 0.0
  %v1141 = vsel %vm58, %v1137, 0.0
  %1142 = vst [vmem:[#allocation1] ss:$2 sm:$0xff] %v1066
  %s1143 = scalar_lea.vmem [#allocation1], 16
  %1144 = vst [vmem:[%s1143] ss:$2 sm:$0xff] %v1067
  %v1145 = vld.sshfl [vmem:[#allocation1] sm:$0xff pattern:$0x75316420]
  %v1146 = vld.sshfl [vmem:[#allocation1 + $0x8] sm:$0xff pattern:$0x75316420]
  %v1147 = vld.sshfl [vmem:[#allocation1 + $0x10] sm:$0xff pattern:$0x75316420]
  %1148 = vrot.lane.b32.xlu0 %v1145, 57
  %v1149 = vpop.permute.xlu0 %1148
  %1150 = vrot.lane.b32.xlu0 %v1146, 57
  %v1151 = vpop.permute.xlu0 %1150
  %1152 = vrot.lane.b32.xlu0 %v1147, 57
  %v1153 = vpop.permute.xlu0 %1152
  %v1154 = vsel %vm128, %v1149, %v1151
  %v1155 = vsel %vm128, %v1151, %v1153
  %v1158 = vsel %vm34, %v1154, 0.0
  %v1159 = vsel %vm35, %v1155, 0.0
  %1160 = vst [vmem:[#allocation1] ss:$2 sm:$0xff] %v1066
  %s1161 = scalar_lea.vmem [#allocation1], 16
  %1162 = vst [vmem:[%s1161] ss:$2 sm:$0xff] %v1067
  %v1163 = vld.sshfl [vmem:[#allocation1] sm:$0xff pattern:$0x75316420]
  %v1164 = vld.sshfl [vmem:[#allocation1 + $0x8] sm:$0xff pattern:$0x75316420]
  %v1165 = vld.sshfl [vmem:[#allocation1 + $0x10] sm:$0xff pattern:$0x75316420]
  %1166 = vrot.lane.b32.xlu0 %v1163, 55
  %v1167 = vpop.permute.xlu0 %1166
  %1168 = vrot.lane.b32.xlu0 %v1164, 55
  %v1169 = vpop.permute.xlu0 %1168
  %1170 = vrot.lane.b32.xlu0 %v1165, 55
  %v1171 = vpop.permute.xlu0 %1170
  %v1172 = vsel %vm147, %v1167, %v1169
  %v1173 = vsel %vm147, %v1169, %v1171
  %v1176 = vsel %vm57, %v1172, 0.0
  %v1177 = vsel %vm58, %v1173, 0.0
  %1178 = vst [vmem:[#allocation1] ss:$2 sm:$0xff] %v1066
  %s1179 = scalar_lea.vmem [#allocation1], 16
  %1180 = vst [vmem:[%s1179] ss:$2 sm:$0xff] %v1067
  %v1181 = vld.sshfl [vmem:[#allocation1] sm:$0xff pattern:$0x75316420]
  %v1182 = vld.sshfl [vmem:[#allocation1 + $0x8] sm:$0xff pattern:$0x75316420]
  %v1183 = vld.sshfl [vmem:[#allocation1 + $0x10] sm:$0xff pattern:$0x75316420]
  %1184 = vrot.lane.b32.xlu0 %v1181, 106
  %v1185 = vpop.permute.xlu0 %1184
  %1186 = vrot.lane.b32.xlu0 %v1182, 106
  %v1187 = vpop.permute.xlu0 %1186
  %1188 = vrot.lane.b32.xlu0 %v1183, 106
  %v1189 = vpop.permute.xlu0 %1188
  %v1190 = vsel %vm168, %v1185, %v1187
  %v1191 = vsel %vm168, %v1187, %v1189
  %v1194 = vsel %vm154, %v1190, 0.0
  %v1195 = vsel %vm155, %v1191, 0.0
  %1196 = vst [vmem:[#allocation1] ss:$2 sm:$0xff] %v1066
  %s1197 = scalar_lea.vmem [#allocation1], 16
  %1198 = vst [vmem:[%s1197] ss:$2 sm:$0xff] %v1067
  %v1199 = vld.sshfl [vmem:[#allocation1] sm:$0xff pattern:$0x75316420]
  %v1200 = vld.sshfl [vmem:[#allocation1 + $0x8] sm:$0xff pattern:$0x75316420]
  %v1201 = vld.sshfl [vmem:[#allocation1 + $0x10] sm:$0xff pattern:$0x75316420]
  %1202 = vrot.lane.b32.xlu0 %v1199, 102
  %v1203 = vpop.permute.xlu0 %1202
  %1204 = vrot.lane.b32.xlu0 %v1200, 102
  %v1205 = vpop.permute.xlu0 %1204
  %1206 = vrot.lane.b32.xlu0 %v1201, 102
  %v1207 = vpop.permute.xlu0 %1206
  %v1208 = vsel %vm189, %v1203, %v1205
  %v1209 = vsel %vm189, %v1205, %v1207
  %v1212 = vsel %vm175, %v1208, 0.0
  %v1213 = vsel %vm176, %v1209, 0.0
  %1214 = vst [vmem:[#allocation1] ss:$2 sm:$0xff] %v1066
  %s1215 = scalar_lea.vmem [#allocation1], 16
  %1216 = vst [vmem:[%s1215] ss:$2 sm:$0xff] %v1067
  %v1217 = vld.sshfl [vmem:[#allocation1] sm:$0xff pattern:$0x75316420]
  %v1218 = vld.sshfl [vmem:[#allocation1 + $0x8] sm:$0xff pattern:$0x75316420]
  %v1219 = vld.sshfl [vmem:[#allocation1 + $0x10] sm:$0xff pattern:$0x75316420]
  %1220 = vrot.lane.b32.xlu0 %v1217, 74
  %v1221 = vpop.permute.xlu0 %1220
  %1222 = vrot.lane.b32.xlu0 %v1218, 74
  %v1223 = vpop.permute.xlu0 %1222
  %1224 = vrot.lane.b32.xlu0 %v1219, 74
  %v1225 = vpop.permute.xlu0 %1224
  %v1226 = vsel %vm208, %v1221, %v1223
  %v1227 = vsel %vm208, %v1223, %v1225
  %v1230 = vsel %vm154, %v1226, 0.0
  %v1231 = vsel %vm155, %v1227, 0.0
  %1232 = vst [vmem:[#allocation1] ss:$2 sm:$0xff] %v1066
  %s1233 = scalar_lea.vmem [#allocation1], 16
  %1234 = vst [vmem:[%s1233] ss:$2 sm:$0xff] %v1067
  %v1235 = vld.sshfl [vmem:[#allocation1] sm:$0xff pattern:$0x75316420]
  %v1236 = vld.sshfl [vmem:[#allocation1 + $0x8] sm:$0xff pattern:$0x75316420]
  %v1237 = vld.sshfl [vmem:[#allocation1 + $0x10] sm:$0xff pattern:$0x75316420]
  %1238 = vrot.lane.b32.xlu0 %v1235, 70
  %v1239 = vpop.permute.xlu0 %1238
  %1240 = vrot.lane.b32.xlu0 %v1236, 70
  %v1241 = vpop.permute.xlu0 %1240
  %1242 = vrot.lane.b32.xlu0 %v1237, 70
  %v1243 = vpop.permute.xlu0 %1242
  %v1244 = vsel %vm227, %v1239, %v1241
  %v1245 = vsel %vm227, %v1241, %v1243
  %v1248 = vsel %vm175, %v1244, 0.0
  %v1249 = vsel %vm176, %v1245, 0.0
  %1250 = vst [vmem:[#allocation1] ss:$2 sm:$0xff] %v1066
  %s1251 = scalar_lea.vmem [#allocation1], 16
  %1252 = vst [vmem:[%s1251] ss:$2 sm:$0xff] %v1067
  %v1253 = vld.sshfl [vmem:[#allocation1] sm:$0xff pattern:$0x75316420]
  %v1254 = vld.sshfl [vmem:[#allocation1 + $0x8] sm:$0xff pattern:$0x75316420]
  %v1255 = vld.sshfl [vmem:[#allocation1 + $0x10] sm:$0xff pattern:$0x75316420]
  %1256 = vrot.lane.b32.xlu0 %v1253, 42
  %v1257 = vpop.permute.xlu0 %1256
  %1258 = vrot.lane.b32.xlu0 %v1254, 42
  %v1259 = vpop.permute.xlu0 %1258
  %1260 = vrot.lane.b32.xlu0 %v1255, 42
  %v1261 = vpop.permute.xlu0 %1260
  %v1262 = vsel %vm246, %v1257, %v1259
  %v1263 = vsel %vm246, %v1259, %v1261
  %v1266 = vsel %vm154, %v1262, 0.0
  %v1267 = vsel %vm155, %v1263, 0.0
  %1268 = vst [vmem:[#allocation1] ss:$2 sm:$0xff] %v1066
  %s1269 = scalar_lea.vmem [#allocation1], 16
  %1270 = vst [vmem:[%s1269] ss:$2 sm:$0xff] %v1067
  %v1271 = vld.sshfl [vmem:[#allocation1] sm:$0xff pattern:$0x75316420]
  %v1272 = vld.sshfl [vmem:[#allocation1 + $0x8] sm:$0xff pattern:$0x75316420]
  %v1273 = vld.sshfl [vmem:[#allocation1 + $0x10] sm:$0xff pattern:$0x75316420]
  %1274 = vrot.lane.b32.xlu0 %v1271, 38
  %v1275 = vpop.permute.xlu0 %1274
  %1276 = vrot.lane.b32.xlu0 %v1272, 38
  %v1277 = vpop.permute.xlu0 %1276
  %1278 = vrot.lane.b32.xlu0 %v1273, 38
  %v1279 = vpop.permute.xlu0 %1278
  %v1280 = vsel %vm265, %v1275, %v1277
  %v1281 = vsel %vm265, %v1277, %v1279
  %v1284 = vsel %vm175, %v1280, 0.0
  %v1285 = vsel %vm176, %v1281, 0.0
  %1286 = vst [vmem:[#allocation1] ss:$2 sm:$0xff] %v1066
  %s1287 = scalar_lea.vmem [#allocation1], 16
  %1288 = vst [vmem:[%s1287] ss:$2 sm:$0xff] %v1067
  %v1289 = vld.sshfl [vmem:[#allocation1] sm:$0xff pattern:$0x75316420]
  %v1290 = vld.sshfl [vmem:[#allocation1 + $0x8] sm:$0xff pattern:$0x75316420]
  %v1291 = vld.sshfl [vmem:[#allocation1 + $0x10] sm:$0xff pattern:$0x75316420]
  %1292 = vrot.lane.b32.xlu0 %v1289, 123
  %v1293 = vpop.permute.xlu0 %1292
  %1294 = vrot.lane.b32.xlu0 %v1290, 123
  %v1295 = vpop.permute.xlu0 %1294
  %1296 = vrot.lane.b32.xlu0 %v1291, 123
  %v1297 = vpop.permute.xlu0 %1296
  %v1298 = vsel %vm286, %v1293, %v1295
  %v1299 = vsel %vm286, %v1295, %v1297
  %v1302 = vsel %vm272, %v1298, 0.0
  %v1303 = vsel %vm273, %v1299, 0.0
  %1304 = vst [vmem:[#allocation1] ss:$2 sm:$0xff] %v1066
  %s1305 = scalar_lea.vmem [#allocation1], 16
  %1306 = vst [vmem:[%s1305] ss:$2 sm:$0xff] %v1067
  %v1307 = vld.sshfl [vmem:[#allocation1] sm:$0xff pattern:$0x75316420]
  %v1308 = vld.sshfl [vmem:[#allocation1 + $0x8] sm:$0xff pattern:$0x75316420]
  %v1309 = vld.sshfl [vmem:[#allocation1 + $0x10] sm:$0xff pattern:$0x75316420]
  %1310 = vrot.lane.b32.xlu0 %v1307, 117
  %v1311 = vpop.permute.xlu0 %1310
  %1312 = vrot.lane.b32.xlu0 %v1308, 117
  %v1313 = vpop.permute.xlu0 %1312
  %1314 = vrot.lane.b32.xlu0 %v1309, 117
  %v1315 = vpop.permute.xlu0 %1314
  %v1316 = vsel %vm307, %v1311, %v1313
  %v1317 = vsel %vm307, %v1313, %v1315
  %v1320 = vsel %vm293, %v1316, 0.0
  %v1321 = vsel %vm294, %v1317, 0.0
  %1322 = vst [vmem:[#allocation1] ss:$2 sm:$0xff] %v1066
  %s1323 = scalar_lea.vmem [#allocation1], 16
  %1324 = vst [vmem:[%s1323] ss:$2 sm:$0xff] %v1067
  %v1325 = vld.sshfl [vmem:[#allocation1] sm:$0xff pattern:$0x75316420]
  %v1326 = vld.sshfl [vmem:[#allocation1 + $0x8] sm:$0xff pattern:$0x75316420]
  %v1327 = vld.sshfl [vmem:[#allocation1 + $0x10] sm:$0xff pattern:$0x75316420]
  %1328 = vrot.lane.b32.xlu0 %v1325, 75
  %v1329 = vpop.permute.xlu0 %1328
  %1330 = vrot.lane.b32.xlu0 %v1326, 75
  %v1331 = vpop.permute.xlu0 %1330
  %1332 = vrot.lane.b32.xlu0 %v1327, 75
  %v1333 = vpop.permute.xlu0 %1332
  %v1334 = vsel %vm326, %v1329, %v1331
  %v1335 = vsel %vm326, %v1331, %v1333
  %v1338 = vsel %vm272, %v1334, 0.0
  %v1339 = vsel %vm273, %v1335, 0.0
  %1340 = vst [vmem:[#allocation1] ss:$2 sm:$0xff] %v1066
  %s1341 = scalar_lea.vmem [#allocation1], 16
  %1342 = vst [vmem:[%s1341] ss:$2 sm:$0xff] %v1067
  %v1343 = vld.sshfl [vmem:[#allocation1] sm:$0xff pattern:$0x75316420]
  %v1344 = vld.sshfl [vmem:[#allocation1 + $0x8] sm:$0xff pattern:$0x75316420]
  %v1345 = vld.sshfl [vmem:[#allocation1 + $0x10] sm:$0xff pattern:$0x75316420]
  %1346 = vrot.lane.b32.xlu0 %v1343, 69
  %v1347 = vpop.permute.xlu0 %1346
  %1348 = vrot.lane.b32.xlu0 %v1344, 69
  %v1349 = vpop.permute.xlu0 %1348
  %1350 = vrot.lane.b32.xlu0 %v1345, 69
  %v1351 = vpop.permute.xlu0 %1350
  %v1352 = vsel %vm345, %v1347, %v1349
  %v1353 = vsel %vm345, %v1349, %v1351
  %v1356 = vsel %vm293, %v1352, 0.0
  %v1357 = vsel %vm294, %v1353, 0.0
  %1358 = vst [vmem:[#allocation1] ss:$2 sm:$0xff] %v1066
  %s1359 = scalar_lea.vmem [#allocation1], 16
  %1360 = vst [vmem:[%s1359] ss:$2 sm:$0xff] %v1067
  %v1361 = vld.sshfl [vmem:[#allocation1] sm:$0xff pattern:$0x75316420]
  %v1362 = vld.sshfl [vmem:[#allocation1 + $0x8] sm:$0xff pattern:$0x75316420]
  %v1363 = vld.sshfl [vmem:[#allocation1 + $0x10] sm:$0xff pattern:$0x75316420]
  %1364 = vrot.lane.b32.xlu0 %v1361, 27
  %v1365 = vpop.permute.xlu0 %1364
  %1366 = vrot.lane.b32.xlu0 %v1362, 27
  %v1367 = vpop.permute.xlu0 %1366
  %1368 = vrot.lane.b32.xlu0 %v1363, 27
  %v1369 = vpop.permute.xlu0 %1368
  %v1370 = vsel %vm364, %v1365, %v1367
  %v1371 = vsel %vm364, %v1367, %v1369
  %v1374 = vsel %vm272, %v1370, 0.0
  %v1375 = vsel %vm273, %v1371, 0.0
  %1376 = vst [vmem:[#allocation1] ss:$2 sm:$0xff] %v1066
  %s1377 = scalar_lea.vmem [#allocation1], 16
  %1378 = vst [vmem:[%s1377] ss:$2 sm:$0xff] %v1067
  %v1379 = vld.sshfl [vmem:[#allocation1] sm:$0xff pattern:$0x75316420]
  %v1380 = vld.sshfl [vmem:[#allocation1 + $0x8] sm:$0xff pattern:$0x75316420]
  %v1381 = vld.sshfl [vmem:[#allocation1 + $0x10] sm:$0xff pattern:$0x75316420]
  %1382 = vrot.lane.b32.xlu0 %v1379, 21
  %v1383 = vpop.permute.xlu0 %1382
  %1384 = vrot.lane.b32.xlu0 %v1380, 21
  %v1385 = vpop.permute.xlu0 %1384
  %1386 = vrot.lane.b32.xlu0 %v1381, 21
  %v1387 = vpop.permute.xlu0 %1386
  %v1388 = vsel %vm383, %v1383, %v1385
  %v1389 = vsel %vm383, %v1385, %v1387
  %v1392 = vsel %vm293, %v1388, 0.0
  %v1393 = vsel %vm294, %v1389, 0.0
  %1394 = vst [vmem:[#allocation1] ss:$2 sm:$0xff] %v1066
  %s1395 = scalar_lea.vmem [#allocation1], 16
  %1396 = vst [vmem:[%s1395] ss:$2 sm:$0xff] %v1067
  %v1397 = vld.sshfl [vmem:[#allocation1] sm:$0xff pattern:$0x75316420]
  %v1398 = vld.sshfl [vmem:[#allocation1 + $0x8] sm:$0xff pattern:$0x75316420]
  %v1399 = vld.sshfl [vmem:[#allocation1 + $0x10] sm:$0xff pattern:$0x75316420]
  %v1405 = vrot.slane %v1086, 4
  %v1406 = vrot.slane %v1087, 4
  %1407 = vrot.lane.b32.xlu0 %v1405, 56
  %v1408 = vpop.permute.xlu0 %1407
  %1409 = vrot.lane.b32.xlu0 %v1406, 56
  %v1410 = vpop.permute.xlu0 %1409
  %v1411 = vsel %vm407, %v1408, %v1410
  %1415 = vst [vmem:[#allocation1] ss:$2 sm:$0xff] %v1066
  %s1416 = scalar_lea.vmem [#allocation1], 16
  %1417 = vst [vmem:[%s1416] ss:$2 sm:$0xff] %v1067
  %v1418 = vld.sshfl [vmem:[#allocation1] sm:$0xff pattern:$0x75316420]
  %v1419 = vld.sshfl [vmem:[#allocation1 + $0x8] sm:$0xff pattern:$0x75316420]
  %v1420 = vld.sshfl [vmem:[#allocation1 + $0x10] sm:$0xff pattern:$0x75316420]
  %1421 = vrot.lane.b32.xlu0 %v1418, 16
  %v1422 = vpop.permute.xlu0 %1421
  %1423 = vrot.lane.b32.xlu0 %v1419, 16
  %v1424 = vpop.permute.xlu0 %1423
  %1425 = vrot.lane.b32.xlu0 %v1420, 16
  %v1426 = vpop.permute.xlu0 %1425
  %v1427 = vsel %vm424, %v1422, %v1424
  %v1428 = vsel %vm424, %v1424, %v1426
  %v1434 = vrot.slane %v1104, 4
  %v1435 = vrot.slane %v1105, 4
  %1436 = vrot.lane.b32.xlu0 %v1434, 56
  %v1437 = vpop.permute.xlu0 %1436
  %1438 = vrot.lane.b32.xlu0 %v1435, 56
  %v1439 = vpop.permute.xlu0 %1438
  %v1440 = vsel %vm407, %v1437, %v1439
  %1446 = vrot.lane.b32.xlu0 %v1122, 56
  %v1447 = vpop.permute.xlu0 %1446
  %1448 = vrot.lane.b32.xlu0 %v1123, 56
  %v1449 = vpop.permute.xlu0 %1448
  %v1450 = vsel %vm407, %v1447, %v1449
  %v1456 = vrot.slane %v1140, 4
  %v1457 = vrot.slane %v1141, 4
  %1458 = vrot.lane.b32.xlu0 %v1456, 56
  %v1459 = vpop.permute.xlu0 %1458
  %1460 = vrot.lane.b32.xlu0 %v1457, 56
  %v1461 = vpop.permute.xlu0 %1460
  %v1462 = vsel %vm407, %v1459, %v1461
  %1468 = vrot.lane.b32.xlu0 %v1158, 56
  %v1469 = vpop.permute.xlu0 %1468
  %1470 = vrot.lane.b32.xlu0 %v1159, 56
  %v1471 = vpop.permute.xlu0 %1470
  %v1472 = vsel %vm407, %v1469, %v1471
  %s1476 = scalar_lea.vmem [#allocation1], 1
  %1477 = vst [vmem:[%s1476] ss:$2 sm:$0xff] %v1066
  %s1478 = scalar_lea.vmem [#allocation1], 17
  %1479 = vst [vmem:[%s1478] ss:$2 sm:$0xff] %v1067
  %v1480 = vld.sshfl [vmem:[#allocation1] sm:$0xff pattern:$0x75316420]
  %v1481 = vld.sshfl [vmem:[#allocation1 + $0x8] sm:$0xff pattern:$0x75316420]
  %v1482 = vld.sshfl [vmem:[#allocation1 + $0x10] sm:$0xff pattern:$0x75316420]
  %1483 = vrot.lane.b32.xlu0 %v1480, 112
  %v1484 = vpop.permute.xlu0 %1483
  %1485 = vrot.lane.b32.xlu0 %v1481, 112
  %v1486 = vpop.permute.xlu0 %1485
  %1487 = vrot.lane.b32.xlu0 %v1482, 112
  %v1488 = vpop.permute.xlu0 %1487
  %v1489 = vsel %vm487, %v1484, %v1486
  %v1490 = vsel %vm487, %v1486, %v1488
  %1496 = vrot.lane.b32.xlu0 %v1176, 56
  %v1497 = vpop.permute.xlu0 %1496
  %1498 = vrot.lane.b32.xlu0 %v1177, 56
  %v1499 = vpop.permute.xlu0 %1498
  %v1500 = vsel %vm407, %v1497, %v1499
  %v1506 = vrot.slane %v1194, 4
  %v1507 = vrot.slane %v1195, 4
  %1508 = vrot.lane.b32.xlu0 %v1506, 56
  %v1509 = vpop.permute.xlu0 %1508
  %1510 = vrot.lane.b32.xlu0 %v1507, 56
  %v1511 = vpop.permute.xlu0 %1510
  %v1512 = vsel %vm407, %v1509, %v1511
  %1516 = vst [vmem:[#allocation1] ss:$2 sm:$0xff] %v1066
  %s1517 = scalar_lea.vmem [#allocation1], 16
  %1518 = vst [vmem:[%s1517] ss:$2 sm:$0xff] %v1067
  %v1519 = vld.sshfl [vmem:[#allocation1] sm:$0xff pattern:$0x75316420]
  %v1520 = vld.sshfl [vmem:[#allocation1 + $0x8] sm:$0xff pattern:$0x75316420]
  %v1521 = vld.sshfl [vmem:[#allocation1 + $0x10] sm:$0xff pattern:$0x75316420]
  %1522 = vrot.lane.b32.xlu0 %v1519, 32
  %v1523 = vpop.permute.xlu0 %1522
  %1524 = vrot.lane.b32.xlu0 %v1520, 32
  %v1525 = vpop.permute.xlu0 %1524
  %1526 = vrot.lane.b32.xlu0 %v1521, 32
  %v1527 = vpop.permute.xlu0 %1526
  %v1528 = vsel %vm527, %v1523, %v1525
  %v1529 = vsel %vm527, %v1525, %v1527
  %v1535 = vrot.slane %v1212, 4
  %v1536 = vrot.slane %v1213, 4
  %1537 = vrot.lane.b32.xlu0 %v1535, 56
  %v1538 = vpop.permute.xlu0 %1537
  %1539 = vrot.lane.b32.xlu0 %v1536, 56
  %v1540 = vpop.permute.xlu0 %1539
  %v1541 = vsel %vm407, %v1538, %v1540
  %1547 = vrot.lane.b32.xlu0 %v1230, 56
  %v1548 = vpop.permute.xlu0 %1547
  %1549 = vrot.lane.b32.xlu0 %v1231, 56
  %v1550 = vpop.permute.xlu0 %1549
  %v1551 = vsel %vm407, %v1548, %v1550
  %v1557 = vrot.slane %v1248, 4
  %v1558 = vrot.slane %v1249, 4
  %1559 = vrot.lane.b32.xlu0 %v1557, 56
  %v1560 = vpop.permute.xlu0 %1559
  %1561 = vrot.lane.b32.xlu0 %v1558, 56
  %v1562 = vpop.permute.xlu0 %1561
  %v1563 = vsel %vm407, %v1560, %v1562
  %1569 = vrot.lane.b32.xlu0 %v1266, 56
  %v1570 = vpop.permute.xlu0 %1569
  %1571 = vrot.lane.b32.xlu0 %v1267, 56
  %v1572 = vpop.permute.xlu0 %1571
  %v1573 = vsel %vm407, %v1570, %v1572
  %s1577 = scalar_lea.vmem [#allocation1], 1
  %1578 = vst [vmem:[%s1577] ss:$2 sm:$0xff] %v1066
  %s1579 = scalar_lea.vmem [#allocation1], 17
  %1580 = vst [vmem:[%s1579] ss:$2 sm:$0xff] %v1067
  %v1581 = vld.sshfl [vmem:[#allocation1] sm:$0xff pattern:$0x75316420]
  %v1582 = vld.sshfl [vmem:[#allocation1 + $0x8] sm:$0xff pattern:$0x75316420]
  %v1583 = vld.sshfl [vmem:[#allocation1 + $0x10] sm:$0xff pattern:$0x75316420]
  %1584 = vrot.lane.b32.xlu0 %v1581, 96
  %v1585 = vpop.permute.xlu0 %1584
  %1586 = vrot.lane.b32.xlu0 %v1582, 96
  %v1587 = vpop.permute.xlu0 %1586
  %1588 = vrot.lane.b32.xlu0 %v1583, 96
  %v1589 = vpop.permute.xlu0 %1588
  %v1590 = vsel %vm590, %v1585, %v1587
  %v1591 = vsel %vm590, %v1587, %v1589
  %v1595 = vsel %vm596, %v1397, %v1408
  %v1596 = vsel %vm596, %v1398, %v1411
  %v1597 = vsel %vm596, %v1399, %v1410
  %v1598 = vsel %vm596, %v1422, %v1437
  %v1599 = vsel %vm596, %v1427, %v1440
  %v1600 = vsel %vm596, %v1428, %v1439
  %v1601 = vsel %vm596, %v1447, %v1459
  %v1602 = vsel %vm596, %v1450, %v1462
  %v1603 = vsel %vm596, %v1449, %v1461
  %v1604 = vsel %vm596, %v1469, %v1489
  %v1605 = vsel %vm596, %v1472, %v1490
  %v1606 = vsel %vm596, %v1471, %v1488
  %v1607 = vsel %vm596, %v1497, %v1509
  %v1608 = vsel %vm596, %v1500, %v1512
  %v1609 = vsel %vm596, %v1499, %v1511
  %v1610 = vsel %vm596, %v1523, %v1538
  %v1611 = vsel %vm596, %v1528, %v1541
  %v1612 = vsel %vm596, %v1529, %v1540
  %v1613 = vsel %vm596, %v1548, %v1560
  %v1614 = vsel %vm596, %v1551, %v1563
  %v1615 = vsel %vm596, %v1550, %v1562
  %v1616 = vsel %vm596, %v1570, %v1590
  %v1617 = vsel %vm596, %v1573, %v1591
  %v1618 = vsel %vm596, %v1572, %v1589
  %v1621 = vrot.slane %v1302, 4
  %v1622 = vrot.slane %v1303, 4
  %1625 = vst [vmem:[#allocation1] ss:$2 sm:$0xff] %v1066
  %s1626 = scalar_lea.vmem [#allocation1], 16
  %1627 = vst [vmem:[%s1626] ss:$2 sm:$0xff] %v1067
  %v1628 = vld.sshfl [vmem:[#allocation1] sm:$0xff pattern:$0x75316420]
  %v1629 = vld.sshfl [vmem:[#allocation1 + $0x8] sm:$0xff pattern:$0x75316420]
  %v1630 = vld.sshfl [vmem:[#allocation1 + $0x10] sm:$0xff pattern:$0x75316420]
  %1631 = vrot.lane.b32.xlu0 %v1628, 120
  %v1632 = vpop.permute.xlu0 %1631
  %1633 = vrot.lane.b32.xlu0 %v1629, 120
  %v1634 = vpop.permute.xlu0 %1633
  %1635 = vrot.lane.b32.xlu0 %v1630, 120
  %v1636 = vpop.permute.xlu0 %1635
  %v1637 = vsel %vm639, %v1632, %v1634
  %v1638 = vsel %vm639, %v1634, %v1636
  %v1643 = vrot.slane %v1320, 4
  %v1644 = vrot.slane %v1321, 4
  %v1649 = vrot.slane %v1356, 4
  %v1650 = vrot.slane %v1357, 4
  %s1653 = scalar_lea.vmem [#allocation1], 1
  %1654 = vst [vmem:[%s1653] ss:$2 sm:$0xff] %v1066
  %s1655 = scalar_lea.vmem [#allocation1], 17
  %1656 = vst [vmem:[%s1655] ss:$2 sm:$0xff] %v1067
  %v1657 = vld.sshfl [vmem:[#allocation1] sm:$0xff pattern:$0x75316420]
  %v1658 = vld.sshfl [vmem:[#allocation1 + $0x8] sm:$0xff pattern:$0x75316420]
  %v1659 = vld.sshfl [vmem:[#allocation1 + $0x10] sm:$0xff pattern:$0x75316420]
  %1660 = vrot.lane.b32.xlu0 %v1657, 24
  %v1661 = vpop.permute.xlu0 %1660
  %1662 = vrot.lane.b32.xlu0 %v1658, 24
  %v1663 = vpop.permute.xlu0 %1662
  %1664 = vrot.lane.b32.xlu0 %v1659, 24
  %v1665 = vpop.permute.xlu0 %1664
  %v1666 = vsel %vm669, %v1661, %v1663
  %v1667 = vsel %vm669, %v1663, %v1665
  %v1670 = vsel %vm596, %v1284, %v1621
  %v1671 = vsel %vm596, %v1285, %v1622
  %v1672 = vsel %vm596, %v1637, %v1643
  %v1673 = vsel %vm596, %v1638, %v1644
  %v1674 = vsel %vm596, %v1338, %v1649
  %v1675 = vsel %vm596, %v1339, %v1650
  %v1676 = vsel %vm596, %v1374, %v1666
  %v1677 = vsel %vm596, %v1375, %v1667
  %1688 = vrot.lane.b32.xlu0 %v1670, 56
  %v1689 = vpop.permute.xlu0 %1688
  %1690 = vrot.lane.b32.xlu0 %v1671, 56
  %v1691 = vpop.permute.xlu0 %1690
  %1692 = vrot.lane.b32.xlu0 %v1672, 56
  %v1693 = vpop.permute.xlu0 %1692
  %1694 = vrot.lane.b32.xlu0 %v1673, 56
  %v1695 = vpop.permute.xlu0 %1694
  %1696 = vrot.lane.b32.xlu0 %v1674, 56
  %v1697 = vpop.permute.xlu0 %1696
  %1698 = vrot.lane.b32.xlu0 %v1675, 56
  %v1699 = vpop.permute.xlu0 %1698
  %1700 = vrot.lane.b32.xlu0 %v1676, 56
  %v1701 = vpop.permute.xlu0 %1700
  %1702 = vrot.lane.b32.xlu0 %v1677, 56
  %v1703 = vpop.permute.xlu0 %1702
  %1704 = vrot.lane.b32.xlu0 %v1392, 56
  %v1705 = vpop.permute.xlu0 %1704
  %1706 = vrot.lane.b32.xlu0 %v1393, 56
  %v1707 = vpop.permute.xlu0 %1706
  %v1708 = vsel %vm407, %v1689, %v1691
  %v1709 = vsel %vm407, %v1693, %v1695
  %v1710 = vsel %vm407, %v1697, %v1699
  %v1711 = vsel %vm407, %v1701, %v1703
  %v1712 = vsel %vm407, %v1705, %v1707
  %1737 = vrot.lane.b32.xlu0 %v1595, 72
  %v1738 = vpop.permute.xlu0 %1737
  %1739 = vrot.lane.b32.xlu0 %v1596, 72
  %v1740 = vpop.permute.xlu0 %1739
  %1741 = vrot.lane.b32.xlu0 %v1597, 72
  %v1742 = vpop.permute.xlu0 %1741
  %1743 = vrot.lane.b32.xlu0 %v1598, 72
  %v1744 = vpop.permute.xlu0 %1743
  %1745 = vrot.lane.b32.xlu0 %v1599, 72
  %v1746 = vpop.permute.xlu0 %1745
  %1747 = vrot.lane.b32.xlu0 %v1600, 72
  %v1748 = vpop.permute.xlu0 %1747
  %1749 = vrot.lane.b32.xlu0 %v1601, 72
  %v1750 = vpop.permute.xlu0 %1749
  %1751 = vrot.lane.b32.xlu0 %v1602, 72
  %v1752 = vpop.permute.xlu0 %1751
  %1753 = vrot.lane.b32.xlu0 %v1603, 72
  %v1754 = vpop.permute.xlu0 %1753
  %1755 = vrot.lane.b32.xlu0 %v1604, 72
  %v1756 = vpop.permute.xlu0 %1755
  %1757 = vrot.lane.b32.xlu0 %v1605, 72
  %v1758 = vpop.permute.xlu0 %1757
  %1759 = vrot.lane.b32.xlu0 %v1606, 72
  %v1760 = vpop.permute.xlu0 %1759
  %1761 = vrot.lane.b32.xlu0 %v1607, 72
  %v1762 = vpop.permute.xlu0 %1761
  %1763 = vrot.lane.b32.xlu0 %v1608, 72
  %v1764 = vpop.permute.xlu0 %1763
  %1765 = vrot.lane.b32.xlu0 %v1609, 72
  %v1766 = vpop.permute.xlu0 %1765
  %1767 = vrot.lane.b32.xlu0 %v1610, 72
  %v1768 = vpop.permute.xlu0 %1767
  %1769 = vrot.lane.b32.xlu0 %v1611, 72
  %v1770 = vpop.permute.xlu0 %1769
  %1771 = vrot.lane.b32.xlu0 %v1612, 72
  %v1772 = vpop.permute.xlu0 %1771
  %1773 = vrot.lane.b32.xlu0 %v1613, 72
  %v1774 = vpop.permute.xlu0 %1773
  %1775 = vrot.lane.b32.xlu0 %v1614, 72
  %v1776 = vpop.permute.xlu0 %1775
  %1777 = vrot.lane.b32.xlu0 %v1615, 72
  %v1778 = vpop.permute.xlu0 %1777
  %1779 = vrot.lane.b32.xlu0 %v1616, 72
  %v1780 = vpop.permute.xlu0 %1779
  %1781 = vrot.lane.b32.xlu0 %v1617, 72
  %v1782 = vpop.permute.xlu0 %1781
  %1783 = vrot.lane.b32.xlu0 %v1618, 72
  %v1784 = vpop.permute.xlu0 %1783
  %1785 = vrot.lane.b32.xlu0 %v1689, 72
  %v1786 = vpop.permute.xlu0 %1785
  %1787 = vrot.lane.b32.xlu0 %v1708, 72
  %v1788 = vpop.permute.xlu0 %1787
  %1789 = vrot.lane.b32.xlu0 %v1691, 72
  %v1790 = vpop.permute.xlu0 %1789
  %1791 = vrot.lane.b32.xlu0 %v1693, 72
  %v1792 = vpop.permute.xlu0 %1791
  %1793 = vrot.lane.b32.xlu0 %v1709, 72
  %v1794 = vpop.permute.xlu0 %1793
  %1795 = vrot.lane.b32.xlu0 %v1695, 72
  %v1796 = vpop.permute.xlu0 %1795
  %1797 = vrot.lane.b32.xlu0 %v1697, 72
  %v1798 = vpop.permute.xlu0 %1797
  %1799 = vrot.lane.b32.xlu0 %v1710, 72
  %v1800 = vpop.permute.xlu0 %1799
  %1801 = vrot.lane.b32.xlu0 %v1699, 72
  %v1802 = vpop.permute.xlu0 %1801
  %1803 = vrot.lane.b32.xlu0 %v1701, 72
  %v1804 = vpop.permute.xlu0 %1803
  %1805 = vrot.lane.b32.xlu0 %v1711, 72
  %v1806 = vpop.permute.xlu0 %1805
  %1807 = vrot.lane.b32.xlu0 %v1703, 72
  %v1808 = vpop.permute.xlu0 %1807
  %1809 = vrot.lane.b32.xlu0 %v1705, 72
  %v1810 = vpop.permute.xlu0 %1809
  %1811 = vrot.lane.b32.xlu0 %v1712, 72
  %v1812 = vpop.permute.xlu0 %1811
  %1813 = vrot.lane.b32.xlu0 %v1707, 72
  %v1814 = vpop.permute.xlu0 %1813
  %v1815 = vsel %vm819, %v1738, %v1740
  %v1816 = vsel %vm819, %v1740, %v1742
  %v1817 = vsel %vm819, %v1744, %v1746
  %v1818 = vsel %vm819, %v1746, %v1748
  %v1819 = vsel %vm819, %v1750, %v1752
  %v1820 = vsel %vm819, %v1752, %v1754
  %v1821 = vsel %vm819, %v1756, %v1758
  %v1822 = vsel %vm819, %v1758, %v1760
  %v1823 = vsel %vm819, %v1762, %v1764
  %v1824 = vsel %vm819, %v1764, %v1766
  %v1825 = vsel %vm819, %v1768, %v1770
  %v1826 = vsel %vm819, %v1770, %v1772
  %v1827 = vsel %vm819, %v1774, %v1776
  %v1828 = vsel %vm819, %v1776, %v1778
  %v1829 = vsel %vm819, %v1780, %v1782
  %v1830 = vsel %vm819, %v1782, %v1784
  %v1831 = vsel %vm819, %v1786, %v1788
  %v1832 = vsel %vm819, %v1788, %v1790
  %v1833 = vsel %vm819, %v1792, %v1794
  %v1834 = vsel %vm819, %v1794, %v1796
  %v1835 = vsel %vm819, %v1798, %v1800
  %v1836 = vsel %vm819, %v1800, %v1802
  %v1837 = vsel %vm819, %v1804, %v1806
  %v1838 = vsel %vm819, %v1806, %v1808
  %v1839 = vsel %vm819, %v1810, %v1812
  %v1840 = vsel %vm819, %v1812, %v1814
  %v1865 = vsel %vm596, %v1839, 0
  %v1867 = vsel %vm596, %v1840, 0
  %1869 = vmatpush.msra.mxu0 0.0
  %1870 = vmatpush.msra.mxu0 0.0
  %1871 = vmatpush.msra.mxu0 0.0
  %1872 = vmatpush.msra.mxu0 %v1865
  %1873 = vmatpush.msra.mxu0 %v1837
  %1874 = vmatpush.msra.mxu0 %v1835
  %1875 = vmatpush.msra.mxu0 %v1833
  %1876 = vmatpush.msra.mxu0 %v1831
  %1877 = vmatpush.msra.mxu0 %v1829
  %1878 = vmatpush.msra.mxu0 %v1827
  %1879 = vmatpush.msra.mxu0 %v1825
  %1880 = vmatpush.msra.mxu0 %v1823
  %1881 = vmatpush.msra.mxu0 %v1821
  %1882 = vmatpush.msra.mxu0 %v1819
  %1883 = vmatpush.msra.mxu0 %v1817
  %1884 = vmatpush.msra.mxu0 %v1815
  %1885 = vmatmul.f32.gmra.mxu0 %v872
  %v1886 = vpop.f32.mrf.mxu0
  %v1887 = vadd.f32 0.0, %v1886
  %1888 = vmatmul.f32.gmra.mxu0 %v875
  %v1889 = vpop.f32.mrf.mxu0
  %v1890 = vadd.f32 0.0, %v1889
  %1891 = vmatmul.f32.gmra.mxu0 %v878
  %v1892 = vpop.f32.mrf.mxu0
  %v1893 = vadd.f32 0.0, %v1892
  %1894 = vmatmul.f32.gmra.mxu0 %v881
  %v1895 = vpop.f32.mrf.mxu0
  %v1896 = vadd.f32 0.0, %v1895
  %1897 = vdwg.mxu0
  %1898 = vmatpush.msra.mxu0 0.0
  %1899 = vmatpush.msra.mxu0 0.0
  %1900 = vmatpush.msra.mxu0 0.0
  %1901 = vmatpush.msra.mxu0 %v1867
  %1902 = vmatpush.msra.mxu0 %v1838
  %1903 = vmatpush.msra.mxu0 %v1836
  %1904 = vmatpush.msra.mxu0 %v1834
  %1905 = vmatpush.msra.mxu0 %v1832
  %1906 = vmatpush.msra.mxu0 %v1830
  %1907 = vmatpush.msra.mxu0 %v1828
  %1908 = vmatpush.msra.mxu0 %v1826
  %1909 = vmatpush.msra.mxu0 %v1824
  %1910 = vmatpush.msra.mxu0 %v1822
  %1911 = vmatpush.msra.mxu0 %v1820
  %1912 = vmatpush.msra.mxu0 %v1818
  %1913 = vmatpush.msra.mxu0 %v1816
  %1914 = vmatmul.f32.gmra.mxu0 %v872
  %v1915 = vpop.f32.mrf.mxu0
  %v1916 = vadd.f32 0.0, %v1915
  %1917 = vmatmul.f32.gmra.mxu0 %v875
  %v1918 = vpop.f32.mrf.mxu0
  %v1919 = vadd.f32 0.0, %v1918
  %1920 = vmatmul.f32.gmra.mxu0 %v878
  %v1921 = vpop.f32.mrf.mxu0
  %v1922 = vadd.f32 0.0, %v1921
  %1923 = vmatmul.f32.gmra.mxu0 %v881
  %v1924 = vpop.f32.mrf.mxu0
  %v1925 = vadd.f32 0.0, %v1924
  %1926 = vdwg.mxu0
  %v1927 = vmul.f32 %v1887, %v948
  %v1928 = vmul.f32 %v1916, %v948
  %v1929 = vmul.f32 %v1890, %v953
  %v1930 = vmul.f32 %v1919, %v953
  %v1931 = vmul.f32 %v1893, %v958
  %v1932 = vmul.f32 %v1922, %v958
  %v1933 = vmul.f32 %v1896, %v963
  %v1934 = vmul.f32 %v1925, %v963
  %v1935 = vadd.f32 %v1927, %v975
  %v1936 = vadd.f32 %v1928, %v975
  %v1937 = vadd.f32 %v1929, %v979
  %v1938 = vadd.f32 %v1930, %v979
  %v1939 = vadd.f32 %v1931, %v983
  %v1940 = vadd.f32 %v1932, %v983
  %v1941 = vadd.f32 %v1933, %v987
  %v1942 = vadd.f32 %v1934, %v987
  %v1943 = vmax.f32 %v1935, 0.0
  %v1944 = vmax.f32 %v1936, 0.0
  %v1945 = vmax.f32 %v1937, 0.0
  %v1946 = vmax.f32 %v1938, 0.0
  %v1947 = vmax.f32 %v1939, 0.0
  %v1948 = vmax.f32 %v1940, 0.0
  %v1949 = vmax.f32 %v1941, 0.0
  %v1950 = vmax.f32 %v1942, 0.0
  %1951 = vmatpush.msra.mxu0 0.0
  %1952 = vmatpush.msra.mxu0 0.0
  %1953 = vmatpush.msra.mxu0 0.0
  %1954 = vmatpush.msra.mxu0 0.0
  %1955 = vmatpush.msra.mxu0 0.0
  %1956 = vmatpush.msra.mxu0 0.0
  %1957 = vmatpush.msra.mxu0 0.0
  %1958 = vmatpush.msra.mxu0 0.0
  %1959 = vmatpush.msra.mxu0 0.0
  %1960 = vmatpush.msra.mxu0 0.0
  %1961 = vmatpush.msra.mxu0 0.0
  %1962 = vmatpush.msra.mxu0 0.0
  %1963 = vmatpush.msra.mxu0 %v1949
  %1964 = vmatpush.msra.mxu0 %v1947
  %1965 = vmatpush.msra.mxu0 %v1945
  %1966 = vmatpush.msra.mxu0 %v1943
  %1967 = vmatmul.f32.gmra.mxu0 %v1006
  %v1968 = vpop.f32.mrf.mxu0
  %v1969 = vadd.f32 0.0, %v1968
  %1970 = vdwg.mxu0
  %1971 = vmatpush.msra.mxu0 0.0
  %1972 = vmatpush.msra.mxu0 0.0
  %1973 = vmatpush.msra.mxu0 0.0
  %1974 = vmatpush.msra.mxu0 0.0
  %1975 = vmatpush.msra.mxu0 0.0
  %1976 = vmatpush.msra.mxu0 0.0
  %1977 = vmatpush.msra.mxu0 0.0
  %1978 = vmatpush.msra.mxu0 0.0
  %1979 = vmatpush.msra.mxu0 0.0
  %1980 = vmatpush.msra.mxu0 0.0
  %1981 = vmatpush.msra.mxu0 0.0
  %1982 = vmatpush.msra.mxu0 0.0
  %1983 = vmatpush.msra.mxu0 %v1950
  %1984 = vmatpush.msra.mxu0 %v1948
  %1985 = vmatpush.msra.mxu0 %v1946
  %1986 = vmatpush.msra.mxu0 %v1944
  %1987 = vmatmul.f32.gmra.mxu0 %v1006
  %v1988 = vpop.f32.mrf.mxu0
  %v1989 = vadd.f32 0.0, %v1988
  %1990 = vdwg.mxu0
  %v1991 = vmul.f32 %v1969, %v1051
  %v1992 = vmul.f32 %v1989, %v1051
  %v1993 = vadd.f32 %v1991, %v1057
  %v1994 = vadd.f32 %v1992, %v1057
  %v1995 = vmax.f32 %v1993, 0.0
  %v1996 = vmax.f32 %v1994, 0.0
  %s1997 = scalar_lea.vmem %s4, 16
  %1998 = vst [vmem:[%s1997] sm:$0xff] %v1995
  %1999 = vst [vmem:[%s1997 + $0x8] sm:$0xff] %v1996
  // Predicated region
  $region18: #{aspp_forward.1} parent=0 // pred_check
    _
  $region19: #{aspp_forward.1} parent=0 // pred_check_branch
    %2001 = sbr.rel (0) target = $region21
  $region20: #{aspp_forward.1} parent=0 // pred_region
    _
  $region21: #{aspp_forward.1} parent=0 // pred_fallthru
    _
  // Predicated region
  $region22: #{aspp_forward.1} parent=0 // pred_check
    _
  $region23: #{aspp_forward.1} parent=0 // pred_check_branch
    %2003 = sbr.rel (0) target = $region25
  $region24: #{aspp_forward.1} parent=0 // pred_region
    _
  $region25: #{aspp_forward.1} parent=0 // pred_fallthru
    _

</llo_original>
